<compile_context>
chip_gen: v7x
topology: tpu7x:2x2x1
jax: 0.10.0
libtpu: 0.0.40
codegen_flags: <defaults>
</compile_context>

<pallas_src>
import functools
import math

import jax
import jax.numpy as jnp
import numpy as np
from jax import lax
from jax.experimental import pallas as pl
from jax.experimental.pallas import tpu as pltpu

LN_EPS = 1e-12
VMEM_LIMIT_BYTES = 48 * 1024 * 1024   # fits v7x (64 MiB VMEM) as well as v5e/v6e


# ----------------------------- in-kernel math helpers -----------------------------

def _gelu_tanh(x):
    # tanh-approximate GELU (EUP-friendly); max abs deviation from erf-GELU ~3e-3.
    c = math.sqrt(2.0 / math.pi)
    return 0.5 * x * (1.0 + jnp.tanh(c * (x + 0.044715 * x * x * x)))


def _layernorm(x, w, b, eps=LN_EPS):
    u = jnp.mean(x, axis=-1, keepdims=True)
    xc = x - u
    s = jnp.mean(xc * xc, axis=-1, keepdims=True)
    return xc * lax.rsqrt(s + eps) * w + b


# --------------------------------- Pallas kernels ----------------------------------

def _attn_body(q_ref, kv_ref, mask_ref, wq_ref, bq_ref, wkv_ref, bkv_ref,
               wo_ref, bo_ref, lnw_ref, lnb_ref, out_ref, scores_ref, ctx_ref,
               num_heads, head_dim):
    """MultiHeadAttention + BertSelfOutput (dense + residual + LayerNorm).

    Operates on one (batch, query-block) tile; K/V use the full key/value sequence.
    `scores_ref` is None when pre-softmax scores are not needed (self-attention).
    """
    H = num_heads * head_dim
    x = q_ref[...]                       # (bq, H)  f32 query-side residual input
    kv = kv_ref[...]                     # (skv, H) f32
    mask = mask_ref[0]                   # (bq, skv) additive mask, f32

    # Projections: bf16 operands on the MXU, f32 accumulation, f32 bias add.
    # 1/sqrt(head_dim) is already folded into wq/bq on the host.
    q = jnp.dot(x.astype(jnp.bfloat16), wq_ref[...],
                preferred_element_type=jnp.float32) + bq_ref[...]
    kvp = jnp.dot(kv.astype(jnp.bfloat16), wkv_ref[...],
                  preferred_element_type=jnp.float32) + bkv_ref[...]

    # Cast once (outside the per-head loop) for the score / context matmuls.
    q_b = q.astype(jnp.bfloat16)
    kv_b = kvp.astype(jnp.bfloat16)
    k_b = kv_b[:, :H]
    v_b = kv_b[:, H:]

    nt_dims = (((1,), (1,)), ((), ()))   # contract last axis of both: q . k^T

    for h in range(num_heads):           # static unroll over heads
        sl = slice(h * head_dim, (h + 1) * head_dim)
        qh, kh, vh = q_b[:, sl], k_b[:, sl], v_b[:, sl]
        sc = lax.dot_general(qh, kh, nt_dims,
                             preferred_element_type=jnp.float32) + mask
        if scores_ref is not None:
            scores_ref[h] = sc           # pre-softmax scores (mask included), f32
        # softmax in f32; reciprocal on the EUP; dropout on probs = identity (eval)
        m = jnp.max(sc, axis=-1, keepdims=True)
        e = jnp.exp(sc - m)
        p = e * pl.reciprocal(jnp.sum(e, axis=-1, keepdims=True), approx=True)
        # write this head's context straight into the VMEM slab (no concatenate)
        ctx_ref[:, sl] = jnp.dot(p.astype(jnp.bfloat16), vh,
                                 preferred_element_type=jnp.float32)

    proj = jnp.dot(ctx_ref[...].astype(jnp.bfloat16), wo_ref[...],
                   preferred_element_type=jnp.float32) + bo_ref[...]
    out_ref[...] = _layernorm(proj + x, lnw_ref[...], lnb_ref[...])


def _attn_kernel(q_ref, kv_ref, mask_ref, wq_ref, bq_ref, wkv_ref, bkv_ref,
                 wo_ref, bo_ref, lnw_ref, lnb_ref, out_ref, ctx_ref,
                 *, num_heads, head_dim):
    _attn_body(q_ref, kv_ref, mask_ref, wq_ref, bq_ref, wkv_ref, bkv_ref,
               wo_ref, bo_ref, lnw_ref, lnb_ref, out_ref, None, ctx_ref,
               num_heads, head_dim)


def _attn_scores_kernel(q_ref, kv_ref, mask_ref, wq_ref, bq_ref, wkv_ref, bkv_ref,
                        wo_ref, bo_ref, lnw_ref, lnb_ref, out_ref, scores_ref,
                        ctx_ref, *, num_heads, head_dim):
    _attn_body(q_ref, kv_ref, mask_ref, wq_ref, bq_ref, wkv_ref, bkv_ref,
               wo_ref, bo_ref, lnw_ref, lnb_ref, out_ref, scores_ref, ctx_ref,
               num_heads, head_dim)


def _ffn_kernel(x_ref, w1_ref, b1_ref, w2_ref, b2_ref, lnw_ref, lnb_ref,
                out_ref, acc_ref):
    """BertIntermediate (dense + GELU) + BertOutput (dense + residual + LayerNorm).

    Grid = (batch, seq-block, intermediate-block); the last axis is a reduction
    accumulated into a f32 VMEM scratch, finalized on the last step.
    """
    i = pl.program_id(2)

    @pl.when(i == 0)
    def _():
        acc_ref[...] = jnp.zeros_like(acc_ref)

    xb = x_ref[...].astype(jnp.bfloat16)                              # (bs, H) bf16
    h = jnp.dot(xb, w1_ref[...], preferred_element_type=jnp.float32) + b1_ref[...]
    h = _gelu_tanh(h)                                                 # (bs, tile_i)
    acc_ref[...] += jnp.dot(h.astype(jnp.bfloat16), w2_ref[...],
                            preferred_element_type=jnp.float32)

    @pl.when(i == pl.num_programs(2) - 1)
    def _():
        x = x_ref[...]
        y = acc_ref[...] + b2_ref[...]
        out_ref[...] = _layernorm(y + x, lnw_ref[...], lnb_ref[...])


# ---------------------------------- wrappers ----------------------------------------

def _pick_sublane_block(n, target=256):
    # rows-per-tile: full if small, else the largest divisor <= target that is a
    # multiple of 8 (vreg sublane count).
    if n <= target:
        return n
    for b in range(target, 7, -1):
        if n % b == 0 and b % 8 == 0:
            return b
    return n


def _pick_lane_block(n, target=512):
    # lane-axis tile: full if small, else the largest divisor <= target that is a
    # multiple of 128 (vreg lane / MXU width).
    if n <= target:
        return n
    for b in range(target, 127, -1):
        if n % b == 0 and b % 128 == 0:
            return b
    return n


def _prep_attn_params(p, head_dim):
    """Fold the 1/sqrt(head_dim) scale into Wq/bq, fuse Wk|Wv, cast weights to bf16."""
    scale = 1.0 / math.sqrt(head_dim)
    wq = (p["wq"] * scale).astype(jnp.bfloat16)
    bq = p["bq"] * scale                                             # f32
    wkv = jnp.concatenate([p["wk"], p["wv"]], axis=1).astype(jnp.bfloat16)
    bkv = jnp.concatenate([p["bk"], p["bv"]], axis=1)                # f32
    wo = p["wo"].astype(jnp.bfloat16)
    return wq, bq, wkv, bkv, wo, p["bo"], p["ln_w"], p["ln_b"]


def decoder_attention(q_in, kv, mask, p, num_heads, *, need_scores):
    B, Sq, H = q_in.shape
    Skv = kv.shape[1]
    head_dim = H // num_heads
    block_q = _pick_sublane_block(Sq)
    grid = (B, Sq // block_q)

    wq, bq, wkv, bkv, wo, bo, lnw, lnb = _prep_attn_params(p, head_dim)

    def _w(shape):
        return pl.BlockSpec(shape, lambda b, q: (0,) * len(shape))

    in_specs = [
        pl.BlockSpec((None, block_q, H), lambda b, q: (b, q, 0)),          # query blk
        pl.BlockSpec((None, Skv, H), lambda b, q: (b, 0, 0)),              # full K/V in
        pl.BlockSpec((None, 1, block_q, Skv), lambda b, q: (b, 0, q, 0)),  # add. mask
        _w((H, H)), _w((1, H)),            # Wq (scaled, bf16), bq (scaled, f32)
        _w((H, 2 * H)), _w((1, 2 * H)),    # fused Wk|Wv (bf16), bk|bv (f32)
        _w((H, H)), _w((1, H)),            # Wo (bf16), bo (f32)
        _w((1, H)), _w((1, H)),            # LN gamma, beta (f32)
    ]
    out_spec_main = pl.BlockSpec((None, block_q, H), lambda b, q: (b, q, 0))
    scratch = [pltpu.VMEM((block_q, H), jnp.float32)]                  # ctx slab
    cparams = pltpu.CompilerParams(
        dimension_semantics=("parallel", "parallel"),
        vmem_limit_bytes=VMEM_LIMIT_BYTES)

    if need_scores:
        kernel = functools.partial(_attn_scores_kernel,
                                   num_heads=num_heads, head_dim=head_dim)
        out_specs = [
            out_spec_main,
            pl.BlockSpec((None, num_heads, block_q, Skv), lambda b, q: (b, 0, q, 0)),
        ]
        out_shape = [
            jax.ShapeDtypeStruct((B, Sq, H), jnp.float32),
            jax.ShapeDtypeStruct((B, num_heads, Sq, Skv), jnp.float32),
        ]
        out, scores = pl.pallas_call(
            kernel, grid=grid, in_specs=in_specs, out_specs=out_specs,
            out_shape=out_shape, scratch_shapes=scratch, compiler_params=cparams,
        )(q_in, kv, mask, wq, bq, wkv, bkv, wo, bo, lnw, lnb)
        return out, scores

    kernel = functools.partial(_attn_kernel, num_heads=num_heads, head_dim=head_dim)
    out = pl.pallas_call(
        kernel, grid=grid, in_specs=in_specs, out_specs=out_spec_main,
        out_shape=jax.ShapeDtypeStruct((B, Sq, H), jnp.float32),
        scratch_shapes=scratch, compiler_params=cparams,
    )(q_in, kv, mask, wq, bq, wkv, bkv, wo, bo, lnw, lnb)
    return out, None


def ffn_block(x, p):
    B, S, H = x.shape
    I = p["w1"].shape[1]
    block_s = _pick_sublane_block(S)
    tile_i = _pick_lane_block(I)
    grid = (B, S // block_s, I // tile_i)

    w1 = p["w1"].astype(jnp.bfloat16)
    w2 = p["w2"].astype(jnp.bfloat16)

    return pl.pallas_call(
        _ffn_kernel,
        grid=grid,
        in_specs=[
            pl.BlockSpec((None, block_s, H), lambda b, s, i: (b, s, 0)),
            pl.BlockSpec((H, tile_i), lambda b, s, i: (0, i)),       # W1 col-tiled
            pl.BlockSpec((1, tile_i), lambda b, s, i: (0, i)),       # b1 col-tiled
            pl.BlockSpec((tile_i, H), lambda b, s, i: (i, 0)),       # W2 row-tiled
            pl.BlockSpec((1, H), lambda b, s, i: (0, 0)),            # b2
            pl.BlockSpec((1, H), lambda b, s, i: (0, 0)),            # LN gamma
            pl.BlockSpec((1, H), lambda b, s, i: (0, 0)),            # LN beta
        ],
        out_specs=pl.BlockSpec((None, block_s, H), lambda b, s, i: (b, s, 0)),
        out_shape=jax.ShapeDtypeStruct((B, S, H), jnp.float32),
        scratch_shapes=[pltpu.VMEM((block_s, H), jnp.float32)],
        compiler_params=pltpu.CompilerParams(
            dimension_semantics=("parallel", "parallel", "arbitrary"),
            vmem_limit_bytes=VMEM_LIMIT_BYTES),
    )(x, w1, p["b1"], w2, p["b2"], p["ln_w"], p["ln_b"])


def decoder_layer(dec_input, enc_output, slf_attn_mask, dec_enc_attn_mask, params,
                  num_heads):
    # Self-attention: its pre-softmax scores are discarded downstream, so the
    # kernel variant without the scores output is used (no dead HBM writes).
    slf_output, _ = decoder_attention(dec_input, dec_input, slf_attn_mask,
                                      params["slf"], num_heads, need_scores=False)
    dec_output, dec_att_scores = decoder_attention(slf_output, enc_output,
                                                   dec_enc_attn_mask, params["enc"],
                                                   num_heads, need_scores=True)
    final = ffn_block(dec_output, params["ffn"])
    return final, dec_att_scores


# -------------------------------- parameter init ------------------------------------

def _init_linear(key, fan_in, fan_out):
    kw, kb = jax.random.split(key)
    bound = 1.0 / math.sqrt(fan_in)
    w = jax.random.uniform(kw, (fan_in, fan_out), jnp.float32, -bound, bound)
    b = jax.random.uniform(kb, (1, fan_out), jnp.float32, -bound, bound)
    return w, b


def _init_attention_params(key, H):
    k = jax.random.split(key, 4)
    wq, bq = _init_linear(k[0], H, H)
    wk, bk = _init_linear(k[1], H, H)
    wv, bv = _init_linear(k[2], H, H)
    wo, bo = _init_linear(k[3], H, H)
    return dict(wq=wq, bq=bq, wk=wk, bk=bk, wv=wv, bv=bv, wo=wo, bo=bo,
                ln_w=jnp.ones((1, H), jnp.float32),
                ln_b=jnp.zeros((1, H), jnp.float32))


def _init_ffn_params(key, H, I):
    k1, k2 = jax.random.split(key)
    w1, b1 = _init_linear(k1, H, I)
    w2, b2 = _init_linear(k2, I, H)
    return dict(w1=w1, b1=b1, w2=w2, b2=b2,
                ln_w=jnp.ones((1, H), jnp.float32),
                ln_b=jnp.zeros((1, H), jnp.float32))


# ---------------------------------- reference ---------------------------------------

def reference_decoder_layer(dec_input, enc_output, slf_mask, dec_enc_mask, params,
                            num_heads):
    PH = lax.Precision.HIGHEST

    def attn_block(q_in, kv, mask, p):
        B, Sq, H = q_in.shape
        Skv = kv.shape[1]
        Dh = H // num_heads
        q = jnp.matmul(q_in, p["wq"], precision=PH) + p["bq"]
        k = jnp.matmul(kv, p["wk"], precision=PH) + p["bk"]
        v = jnp.matmul(kv, p["wv"], precision=PH) + p["bv"]
        qh = q.reshape(B, Sq, num_heads, Dh).transpose(0, 2, 1, 3)
        kh = k.reshape(B, Skv, num_heads, Dh).transpose(0, 2, 1, 3)
        vh = v.reshape(B, Skv, num_heads, Dh).transpose(0, 2, 1, 3)
        scores = jnp.matmul(qh, kh.transpose(0, 1, 3, 2), precision=PH) / math.sqrt(Dh)
        scores = scores + mask
        probs = jax.nn.softmax(scores, axis=-1)
        ctx = jnp.matmul(probs, vh, precision=PH)
        ctx = ctx.transpose(0, 2, 1, 3).reshape(B, Sq, H)
        proj = jnp.matmul(ctx, p["wo"], precision=PH) + p["bo"]
        return _layernorm(proj + q_in, p["ln_w"], p["ln_b"]), scores

    slf_out, _ = attn_block(dec_input, dec_input, slf_mask, params["slf"])
    dec_out, dec_scores = attn_block(slf_out, enc_output, dec_enc_mask, params["enc"])
    p = params["ffn"]
    h = jnp.matmul(dec_out, p["w1"], precision=PH) + p["b1"]
    h = h * 0.5 * (1.0 + jax.scipy.special.erf(h / math.sqrt(2.0)))
    y = jnp.matmul(h, p["w2"], precision=PH) + p["b2"]
    final = _layernorm(y + dec_out, p["ln_w"], p["ln_b"])
    return final, dec_scores


# ------------------------------------- main ------------------------------------------

if __name__ == "__main__":
    B, S_DEC, S_ENC, H, NUM_HEADS, INTER = 2, 8, 8, 32, 4, 64

    root = jax.random.PRNGKey(0)
    k_slf, k_enc, k_ffn, k_x, k_e = jax.random.split(root, 5)
    params = {
        "slf": _init_attention_params(k_slf, H),
        "enc": _init_attention_params(k_enc, H),
        "ffn": _init_ffn_params(k_ffn, H, INTER),
    }

    dec_input = jax.random.normal(k_x, (B, S_DEC, H), jnp.float32)
    enc_output = jax.random.normal(k_e, (B, S_ENC, H), jnp.float32)

    # causal self-attention mask (0 allowed, -1e9 masked); no mask for cross-attention
    causal = jnp.tril(jnp.ones((S_DEC, S_DEC), jnp.float32))
    slf_mask = jnp.broadcast_to(((1.0 - causal) * -1e9)[None, None, :, :],
                                (B, 1, S_DEC, S_DEC)).astype(jnp.float32)
    dec_enc_mask = jnp.zeros((B, 1, S_DEC, S_ENC), jnp.float32)

    out, scores = decoder_layer(dec_input, enc_output, slf_mask, dec_enc_mask,
                                params, NUM_HEADS)
    jax.block_until_ready((out, scores))

    ref_out, ref_scores = reference_decoder_layer(dec_input, enc_output, slf_mask,
                                                  dec_enc_mask, params, NUM_HEADS)
    assert out.shape == (B, S_DEC, H) and scores.shape == (B, NUM_HEADS, S_DEC, S_ENC)
    # Tolerance accounts for bf16 MXU operands + tanh-GELU vs the f32/erf reference.
    assert np.allclose(np.asarray(out), np.asarray(ref_out), atol=5e-2, rtol=5e-2), \
        "decoder output mismatch vs reference"
    assert np.allclose(np.asarray(scores), np.asarray(ref_scores), atol=5e-2, rtol=5e-2), \
        "attention scores mismatch vs reference"

    print("KERNEL_OK")
</pallas_src>

<mosaic_0001>
module attributes {stable_mosaic.version = 11 : i64} {
  func.func @_attn_kernel(%arg0: i32, %arg1: i32, %arg2: memref<1x8x32xf32, #tpu.memory_space<vmem>>, %arg3: memref<1x8x32xf32, #tpu.memory_space<vmem>>, %arg4: memref<1x1x8x8xf32, #tpu.memory_space<vmem>>, %arg5: memref<32x32xbf16, #tpu.memory_space<vmem>>, %arg6: memref<1x32xf32, #tpu.memory_space<vmem>>, %arg7: memref<32x64xbf16, #tpu.memory_space<vmem>>, %arg8: memref<1x64xf32, #tpu.memory_space<vmem>>, %arg9: memref<32x32xbf16, #tpu.memory_space<vmem>>, %arg10: memref<1x32xf32, #tpu.memory_space<vmem>>, %arg11: memref<1x32xf32, #tpu.memory_space<vmem>>, %arg12: memref<1x32xf32, #tpu.memory_space<vmem>>, %arg13: memref<1x8x32xf32, #tpu.memory_space<vmem>>, %arg14: memref<8x32xf32, #tpu.memory_space<vmem>>) attributes {dimension_semantics = [#tpu.dimension_semantics<parallel>, #tpu.dimension_semantics<parallel>], iteration_bounds = array<i64: 2, 1>, scalar_prefetch = 0 : i64, scratch_operands = 1 : i64, tpu.core_type = #tpu.core_type<tc>, window_params = [{transform_indices = @transform_0, window_bounds = array<i64: 1, 8, 32>}, {transform_indices = @transform_1, window_bounds = array<i64: 1, 8, 32>}, {transform_indices = @transform_2, window_bounds = array<i64: 1, 1, 8, 8>}, {pipeline_mode = #tpu.pipeline_mode<synchronous>, transform_indices = @transform_3, window_bounds = array<i64: 32, 32>}, {pipeline_mode = #tpu.pipeline_mode<synchronous>, transform_indices = @transform_4, window_bounds = array<i64: 1, 32>}, {pipeline_mode = #tpu.pipeline_mode<synchronous>, transform_indices = @transform_5, window_bounds = array<i64: 32, 64>}, {pipeline_mode = #tpu.pipeline_mode<synchronous>, transform_indices = @transform_6, window_bounds = array<i64: 1, 64>}, {pipeline_mode = #tpu.pipeline_mode<synchronous>, transform_indices = @transform_7, window_bounds = array<i64: 32, 32>}, {pipeline_mode = #tpu.pipeline_mode<synchronous>, transform_indices = @transform_8, window_bounds = array<i64: 1, 32>}, {pipeline_mode = #tpu.pipeline_mode<synchronous>, transform_indices = @transform_9, window_bounds = array<i64: 1, 32>}, {pipeline_mode = #tpu.pipeline_mode<synchronous>, transform_indices = @transform_10, window_bounds = array<i64: 1, 32>}, {transform_indices = @transform_11, window_bounds = array<i64: 1, 8, 32>}]} {
    %c0 = arith.constant 0 : index
    %c0_0 = arith.constant 0 : index
    %c0_1 = arith.constant 0 : index
    %0 = vector.load %arg2[%c0, %c0_0, %c0_1] : memref<1x8x32xf32, #tpu.memory_space<vmem>>, vector<1x8x32xf32>
    %1 = vector.shape_cast %0 : vector<1x8x32xf32> to vector<8x32xf32>
    %c0_2 = arith.constant 0 : index
    %c0_3 = arith.constant 0 : index
    %c0_4 = arith.constant 0 : index
    %2 = vector.load %arg3[%c0_2, %c0_3, %c0_4] : memref<1x8x32xf32, #tpu.memory_space<vmem>>, vector<1x8x32xf32>
    %3 = vector.shape_cast %2 : vector<1x8x32xf32> to vector<8x32xf32>
    %c0_5 = arith.constant 0 : index
    %c0_6 = arith.constant 0 : index
    %c0_7 = arith.constant 0 : index
    %c0_8 = arith.constant 0 : index
    %4 = vector.load %arg4[%c0_5, %c0_6, %c0_7, %c0_8] : memref<1x1x8x8xf32, #tpu.memory_space<vmem>>, vector<1x1x8x8xf32>
    %5 = vector.shape_cast %4 : vector<1x1x8x8xf32> to vector<8x8xf32>
    %6 = arith.truncf %1 : vector<8x32xf32> to vector<8x32xbf16>
    %c0_9 = arith.constant 0 : index
    %c0_10 = arith.constant 0 : index
    %7 = vector.load %arg5[%c0_9, %c0_10] : memref<32x32xbf16, #tpu.memory_space<vmem>>, vector<32x32xbf16>
    %cst = arith.constant dense<0.000000e+00> : vector<8x32xf32>
    %8 = tpu.matmul %6, %7, %cst {dimension_numbers = #tpu.dot_dimension_numbers<[1], [0], [0], [1], [0, 0, 1, 1], [], []>} : vector<8x32xbf16>, vector<32x32xbf16>, vector<8x32xf32> -> vector<8x32xf32>
    %c0_11 = arith.constant 0 : index
    %c0_12 = arith.constant 0 : index
    %9 = vector.load %arg6[%c0_11, %c0_12] : memref<1x32xf32, #tpu.memory_space<vmem>>, vector<1x32xf32>
    %10 = vector.broadcast %9 : vector<1x32xf32> to vector<8x32xf32>
    %11 = arith.addf %8, %10 : vector<8x32xf32>
    %12 = arith.truncf %3 : vector<8x32xf32> to vector<8x32xbf16>
    %c0_13 = arith.constant 0 : index
    %c0_14 = arith.constant 0 : index
    %13 = vector.load %arg7[%c0_13, %c0_14] : memref<32x64xbf16, #tpu.memory_space<vmem>>, vector<32x64xbf16>
    %cst_15 = arith.constant dense<0.000000e+00> : vector<8x64xf32>
    %14 = tpu.matmul %12, %13, %cst_15 {dimension_numbers = #tpu.dot_dimension_numbers<[1], [0], [0], [1], [0, 0, 1, 1], [], []>} : vector<8x32xbf16>, vector<32x64xbf16>, vector<8x64xf32> -> vector<8x64xf32>
    %c0_16 = arith.constant 0 : index
    %c0_17 = arith.constant 0 : index
    %15 = vector.load %arg8[%c0_16, %c0_17] : memref<1x64xf32, #tpu.memory_space<vmem>>, vector<1x64xf32>
    %16 = vector.broadcast %15 : vector<1x64xf32> to vector<8x64xf32>
    %17 = arith.addf %14, %16 : vector<8x64xf32>
    %18 = arith.truncf %11 : vector<8x32xf32> to vector<8x32xbf16>
    %19 = arith.truncf %17 : vector<8x64xf32> to vector<8x64xbf16>
    %20 = vector.extract_strided_slice %19 {offsets = [0, 0], sizes = [8, 32], strides = [1, 1]} : vector<8x64xbf16> to vector<8x32xbf16>
    %21 = vector.extract_strided_slice %19 {offsets = [0, 32], sizes = [8, 32], strides = [1, 1]} : vector<8x64xbf16> to vector<8x32xbf16>
    %22 = vector.extract_strided_slice %18 {offsets = [0, 0], sizes = [8, 8], strides = [1, 1]} : vector<8x32xbf16> to vector<8x8xbf16>
    %23 = vector.extract_strided_slice %20 {offsets = [0, 0], sizes = [8, 8], strides = [1, 1]} : vector<8x32xbf16> to vector<8x8xbf16>
    %24 = vector.extract_strided_slice %21 {offsets = [0, 0], sizes = [8, 8], strides = [1, 1]} : vector<8x32xbf16> to vector<8x8xbf16>
    %cst_18 = arith.constant dense<0.000000e+00> : vector<8x8xf32>
    %25 = tpu.matmul %22, %23, %cst_18 {dimension_numbers = #tpu.dot_dimension_numbers<[1], [1], [0], [0], [0, 0, 1, 0], [], []>} : vector<8x8xbf16>, vector<8x8xbf16>, vector<8x8xf32> -> vector<8x8xf32>
    %26 = arith.addf %25, %5 : vector<8x8xf32>
    %cst_19 = arith.constant dense<0xFF800000> : vector<8xf32>
    %27 = vector.multi_reduction <maximumf>, %26, %cst_19 [1] : vector<8x8xf32> to vector<8xf32>
    %28 = vector.shape_cast %27 : vector<8xf32> to vector<8x1xf32>
    %29 = vector.broadcast %28 : vector<8x1xf32> to vector<8x8xf32>
    %30 = arith.subf %26, %29 : vector<8x8xf32>
    %31 = math.exp %30 : vector<8x8xf32>
    %cst_20 = arith.constant dense<0.000000e+00> : vector<8xf32>
    %32 = vector.multi_reduction <add>, %31, %cst_20 [1] : vector<8x8xf32> to vector<8xf32>
    %33 = vector.shape_cast %32 : vector<8xf32> to vector<8x1xf32>
    %34 = tpu.reciprocal %33 {approx = true} : vector<8x1xf32> -> vector<8x1xf32>
    %35 = vector.broadcast %34 : vector<8x1xf32> to vector<8x8xf32>
    %36 = arith.mulf %31, %35 : vector<8x8xf32>
    %37 = arith.truncf %36 : vector<8x8xf32> to vector<8x8xbf16>
    %cst_21 = arith.constant dense<0.000000e+00> : vector<8x8xf32>
    %38 = tpu.matmul %37, %24, %cst_21 {dimension_numbers = #tpu.dot_dimension_numbers<[1], [0], [0], [1], [0, 0, 1, 1], [], []>} : vector<8x8xbf16>, vector<8x8xbf16>, vector<8x8xf32> -> vector<8x8xf32>
    %c0_22 = arith.constant 0 : index
    %c0_23 = arith.constant 0 : index
    %39 = vector.load %arg14[%c0_22, %c0_23] : memref<8x32xf32, #tpu.memory_space<vmem>>, vector<8x8xf32>
    tpu.vector_store %arg14[%c0_22, %c0_23], %38 {strides = array<i32>} : memref<8x32xf32, #tpu.memory_space<vmem>>, vector<8x8xf32>,
    %40 = vector.extract_strided_slice %18 {offsets = [0, 8], sizes = [8, 8], strides = [1, 1]} : vector<8x32xbf16> to vector<8x8xbf16>
    %41 = vector.extract_strided_slice %20 {offsets = [0, 8], sizes = [8, 8], strides = [1, 1]} : vector<8x32xbf16> to vector<8x8xbf16>
    %42 = vector.extract_strided_slice %21 {offsets = [0, 8], sizes = [8, 8], strides = [1, 1]} : vector<8x32xbf16> to vector<8x8xbf16>
    %cst_24 = arith.constant dense<0.000000e+00> : vector<8x8xf32>
    %43 = tpu.matmul %40, %41, %cst_24 {dimension_numbers = #tpu.dot_dimension_numbers<[1], [1], [0], [0], [0, 0, 1, 0], [], []>} : vector<8x8xbf16>, vector<8x8xbf16>, vector<8x8xf32> -> vector<8x8xf32>
    %44 = arith.addf %43, %5 : vector<8x8xf32>
    %cst_25 = arith.constant dense<0xFF800000> : vector<8xf32>
    %45 = vector.multi_reduction <maximumf>, %44, %cst_25 [1] : vector<8x8xf32> to vector<8xf32>
    %46 = vector.shape_cast %45 : vector<8xf32> to vector<8x1xf32>
    %47 = vector.broadcast %46 : vector<8x1xf32> to vector<8x8xf32>
    %48 = arith.subf %44, %47 : vector<8x8xf32>
    %49 = math.exp %48 : vector<8x8xf32>
    %cst_26 = arith.constant dense<0.000000e+00> : vector<8xf32>
    %50 = vector.multi_reduction <add>, %49, %cst_26 [1] : vector<8x8xf32> to vector<8xf32>
    %51 = vector.shape_cast %50 : vector<8xf32> to vector<8x1xf32>
    %52 = tpu.reciprocal %51 {approx = true} : vector<8x1xf32> -> vector<8x1xf32>
    %53 = vector.broadcast %52 : vector<8x1xf32> to vector<8x8xf32>
    %54 = arith.mulf %49, %53 : vector<8x8xf32>
    %55 = arith.truncf %54 : vector<8x8xf32> to vector<8x8xbf16>
    %cst_27 = arith.constant dense<0.000000e+00> : vector<8x8xf32>
    %56 = tpu.matmul %55, %42, %cst_27 {dimension_numbers = #tpu.dot_dimension_numbers<[1], [0], [0], [1], [0, 0, 1, 1], [], []>} : vector<8x8xbf16>, vector<8x8xbf16>, vector<8x8xf32> -> vector<8x8xf32>
    %c0_28 = arith.constant 0 : index
    %c8 = arith.constant 8 : index
    %57 = vector.load %arg14[%c0_28, %c8] : memref<8x32xf32, #tpu.memory_space<vmem>>, vector<8x8xf32>
    tpu.vector_store %arg14[%c0_28, %c8], %56 {strides = array<i32>} : memref<8x32xf32, #tpu.memory_space<vmem>>, vector<8x8xf32>,
    %58 = vector.extract_strided_slice %18 {offsets = [0, 16], sizes = [8, 8], strides = [1, 1]} : vector<8x32xbf16> to vector<8x8xbf16>
    %59 = vector.extract_strided_slice %20 {offsets = [0, 16], sizes = [8, 8], strides = [1, 1]} : vector<8x32xbf16> to vector<8x8xbf16>
    %60 = vector.extract_strided_slice %21 {offsets = [0, 16], sizes = [8, 8], strides = [1, 1]} : vector<8x32xbf16> to vector<8x8xbf16>
    %cst_29 = arith.constant dense<0.000000e+00> : vector<8x8xf32>
    %61 = tpu.matmul %58, %59, %cst_29 {dimension_numbers = #tpu.dot_dimension_numbers<[1], [1], [0], [0], [0, 0, 1, 0], [], []>} : vector<8x8xbf16>, vector<8x8xbf16>, vector<8x8xf32> -> vector<8x8xf32>
    %62 = arith.addf %61, %5 : vector<8x8xf32>
    %cst_30 = arith.constant dense<0xFF800000> : vector<8xf32>
    %63 = vector.multi_reduction <maximumf>, %62, %cst_30 [1] : vector<8x8xf32> to vector<8xf32>
    %64 = vector.shape_cast %63 : vector<8xf32> to vector<8x1xf32>
    %65 = vector.broadcast %64 : vector<8x1xf32> to vector<8x8xf32>
    %66 = arith.subf %62, %65 : vector<8x8xf32>
    %67 = math.exp %66 : vector<8x8xf32>
    %cst_31 = arith.constant dense<0.000000e+00> : vector<8xf32>
    %68 = vector.multi_reduction <add>, %67, %cst_31 [1] : vector<8x8xf32> to vector<8xf32>
    %69 = vector.shape_cast %68 : vector<8xf32> to vector<8x1xf32>
    %70 = tpu.reciprocal %69 {approx = true} : vector<8x1xf32> -> vector<8x1xf32>
    %71 = vector.broadcast %70 : vector<8x1xf32> to vector<8x8xf32>
    %72 = arith.mulf %67, %71 : vector<8x8xf32>
    %73 = arith.truncf %72 : vector<8x8xf32> to vector<8x8xbf16>
    %cst_32 = arith.constant dense<0.000000e+00> : vector<8x8xf32>
    %74 = tpu.matmul %73, %60, %cst_32 {dimension_numbers = #tpu.dot_dimension_numbers<[1], [0], [0], [1], [0, 0, 1, 1], [], []>} : vector<8x8xbf16>, vector<8x8xbf16>, vector<8x8xf32> -> vector<8x8xf32>
    %c0_33 = arith.constant 0 : index
    %c16 = arith.constant 16 : index
    %75 = vector.load %arg14[%c0_33, %c16] : memref<8x32xf32, #tpu.memory_space<vmem>>, vector<8x8xf32>
    tpu.vector_store %arg14[%c0_33, %c16], %74 {strides = array<i32>} : memref<8x32xf32, #tpu.memory_space<vmem>>, vector<8x8xf32>,
    %76 = vector.extract_strided_slice %18 {offsets = [0, 24], sizes = [8, 8], strides = [1, 1]} : vector<8x32xbf16> to vector<8x8xbf16>
    %77 = vector.extract_strided_slice %20 {offsets = [0, 24], sizes = [8, 8], strides = [1, 1]} : vector<8x32xbf16> to vector<8x8xbf16>
    %78 = vector.extract_strided_slice %21 {offsets = [0, 24], sizes = [8, 8], strides = [1, 1]} : vector<8x32xbf16> to vector<8x8xbf16>
    %cst_34 = arith.constant dense<0.000000e+00> : vector<8x8xf32>
    %79 = tpu.matmul %76, %77, %cst_34 {dimension_numbers = #tpu.dot_dimension_numbers<[1], [1], [0], [0], [0, 0, 1, 0], [], []>} : vector<8x8xbf16>, vector<8x8xbf16>, vector<8x8xf32> -> vector<8x8xf32>
    %80 = arith.addf %79, %5 : vector<8x8xf32>
    %cst_35 = arith.constant dense<0xFF800000> : vector<8xf32>
    %81 = vector.multi_reduction <maximumf>, %80, %cst_35 [1] : vector<8x8xf32> to vector<8xf32>
    %82 = vector.shape_cast %81 : vector<8xf32> to vector<8x1xf32>
    %83 = vector.broadcast %82 : vector<8x1xf32> to vector<8x8xf32>
    %84 = arith.subf %80, %83 : vector<8x8xf32>
    %85 = math.exp %84 : vector<8x8xf32>
    %cst_36 = arith.constant dense<0.000000e+00> : vector<8xf32>
    %86 = vector.multi_reduction <add>, %85, %cst_36 [1] : vector<8x8xf32> to vector<8xf32>
    %87 = vector.shape_cast %86 : vector<8xf32> to vector<8x1xf32>
    %88 = tpu.reciprocal %87 {approx = true} : vector<8x1xf32> -> vector<8x1xf32>
    %89 = vector.broadcast %88 : vector<8x1xf32> to vector<8x8xf32>
    %90 = arith.mulf %85, %89 : vector<8x8xf32>
    %91 = arith.truncf %90 : vector<8x8xf32> to vector<8x8xbf16>
    %cst_37 = arith.constant dense<0.000000e+00> : vector<8x8xf32>
    %92 = tpu.matmul %91, %78, %cst_37 {dimension_numbers = #tpu.dot_dimension_numbers<[1], [0], [0], [1], [0, 0, 1, 1], [], []>} : vector<8x8xbf16>, vector<8x8xbf16>, vector<8x8xf32> -> vector<8x8xf32>
    %c0_38 = arith.constant 0 : index
    %c24 = arith.constant 24 : index
    %93 = vector.load %arg14[%c0_38, %c24] : memref<8x32xf32, #tpu.memory_space<vmem>>, vector<8x8xf32>
    tpu.vector_store %arg14[%c0_38, %c24], %92 {strides = array<i32>} : memref<8x32xf32, #tpu.memory_space<vmem>>, vector<8x8xf32>,
    %c0_39 = arith.constant 0 : index
    %c0_40 = arith.constant 0 : index
    %94 = vector.load %arg14[%c0_39, %c0_40] : memref<8x32xf32, #tpu.memory_space<vmem>>, vector<8x32xf32>
    %95 = arith.truncf %94 : vector<8x32xf32> to vector<8x32xbf16>
    %c0_41 = arith.constant 0 : index
    %c0_42 = arith.constant 0 : index
    %96 = vector.load %arg9[%c0_41, %c0_42] : memref<32x32xbf16, #tpu.memory_space<vmem>>, vector<32x32xbf16>
    %cst_43 = arith.constant dense<0.000000e+00> : vector<8x32xf32>
    %97 = tpu.matmul %95, %96, %cst_43 {dimension_numbers = #tpu.dot_dimension_numbers<[1], [0], [0], [1], [0, 0, 1, 1], [], []>} : vector<8x32xbf16>, vector<32x32xbf16>, vector<8x32xf32> -> vector<8x32xf32>
    %c0_44 = arith.constant 0 : index
    %c0_45 = arith.constant 0 : index
    %98 = vector.load %arg10[%c0_44, %c0_45] : memref<1x32xf32, #tpu.memory_space<vmem>>, vector<1x32xf32>
    %99 = vector.broadcast %98 : vector<1x32xf32> to vector<8x32xf32>
    %100 = arith.addf %97, %99 : vector<8x32xf32>
    %101 = arith.addf %100, %1 : vector<8x32xf32>
    %c0_46 = arith.constant 0 : index
    %c0_47 = arith.constant 0 : index
    %102 = vector.load %arg11[%c0_46, %c0_47] : memref<1x32xf32, #tpu.memory_space<vmem>>, vector<1x32xf32>
    %c0_48 = arith.constant 0 : index
    %c0_49 = arith.constant 0 : index
    %103 = vector.load %arg12[%c0_48, %c0_49] : memref<1x32xf32, #tpu.memory_space<vmem>>, vector<1x32xf32>
    %cst_50 = arith.constant dense<0.000000e+00> : vector<8xf32>
    %104 = vector.multi_reduction <add>, %101, %cst_50 [1] : vector<8x32xf32> to vector<8xf32>
    %105 = vector.shape_cast %104 : vector<8xf32> to vector<8x1xf32>
    %cst_51 = arith.constant 3.200000e+01 : f32
    %106 = vector.broadcast %cst_51 : f32 to vector<8x1xf32>
    %107 = arith.divf %105, %106 : vector<8x1xf32>
    %108 = vector.broadcast %107 : vector<8x1xf32> to vector<8x32xf32>
    %109 = arith.subf %101, %108 : vector<8x32xf32>
    %110 = arith.mulf %109, %109 : vector<8x32xf32>
    %cst_52 = arith.constant dense<0.000000e+00> : vector<8xf32>
    %111 = vector.multi_reduction <add>, %110, %cst_52 [1] : vector<8x32xf32> to vector<8xf32>
    %112 = vector.shape_cast %111 : vector<8xf32> to vector<8x1xf32>
    %cst_53 = arith.constant 3.200000e+01 : f32
    %113 = vector.broadcast %cst_53 : f32 to vector<8x1xf32>
    %114 = arith.divf %112, %113 : vector<8x1xf32>
    %cst_54 = arith.constant 9.99999996E-13 : f32
    %115 = vector.broadcast %cst_54 : f32 to vector<8x1xf32>
    %116 = arith.addf %114, %115 : vector<8x1xf32>
    %117 = math.rsqrt %116 : vector<8x1xf32>
    %118 = vector.broadcast %117 : vector<8x1xf32> to vector<8x32xf32>
    %119 = arith.mulf %109, %118 : vector<8x32xf32>
    %120 = vector.broadcast %102 : vector<1x32xf32> to vector<8x32xf32>
    %121 = arith.mulf %119, %120 : vector<8x32xf32>
    %122 = vector.broadcast %103 : vector<1x32xf32> to vector<8x32xf32>
    %123 = arith.addf %121, %122 : vector<8x32xf32>
    %c0_55 = arith.constant 0 : index
    %c0_56 = arith.constant 0 : index
    %c0_57 = arith.constant 0 : index
    %124 = vector.load %arg13[%c0_55, %c0_56, %c0_57] : memref<1x8x32xf32, #tpu.memory_space<vmem>>, vector<1x8x32xf32>
    %125 = vector.shape_cast %124 : vector<1x8x32xf32> to vector<8x32xf32>
    %126 = vector.shape_cast %123 : vector<8x32xf32> to vector<1x8x32xf32>
    tpu.vector_store %arg13[%c0_55, %c0_56, %c0_57], %126 {strides = array<i32>} : memref<1x8x32xf32, #tpu.memory_space<vmem>>, vector<1x8x32xf32>,
    return
  }
  func.func @transform_0(%arg0: i32, %arg1: i32) -> (i32, i32, i32) {
    %c0_i32 = arith.constant 0 : i32
    %c0_i32_0 = arith.constant 0 : i32
    return %arg0, %arg1, %c0_i32 : i32, i32, i32
  }
  func.func @transform_1(%arg0: i32, %arg1: i32) -> (i32, i32, i32) {
    %c0_i32 = arith.constant 0 : i32
    %c0_i32_0 = arith.constant 0 : i32
    %c0_i32_1 = arith.constant 0 : i32
    return %arg0, %c0_i32, %c0_i32_0 : i32, i32, i32
  }
  func.func @transform_2(%arg0: i32, %arg1: i32) -> (i32, i32, i32, i32) {
    %c0_i32 = arith.constant 0 : i32
    %c0_i32_0 = arith.constant 0 : i32
    %c0_i32_1 = arith.constant 0 : i32
    return %arg0, %c0_i32, %arg1, %c0_i32_0 : i32, i32, i32, i32
  }
  func.func @transform_3(%arg0: i32, %arg1: i32) -> (i32, i32) {
    %c0_i32 = arith.constant 0 : i32
    %c0_i32_0 = arith.constant 0 : i32
    %c0_i32_1 = arith.constant 0 : i32
    return %c0_i32, %c0_i32_0 : i32, i32
  }
  func.func @transform_4(%arg0: i32, %arg1: i32) -> (i32, i32) {
    %c0_i32 = arith.constant 0 : i32
    %c0_i32_0 = arith.constant 0 : i32
    %c0_i32_1 = arith.constant 0 : i32
    return %c0_i32, %c0_i32_0 : i32, i32
  }
  func.func @transform_5(%arg0: i32, %arg1: i32) -> (i32, i32) {
    %c0_i32 = arith.constant 0 : i32
    %c0_i32_0 = arith.constant 0 : i32
    %c0_i32_1 = arith.constant 0 : i32
    return %c0_i32, %c0_i32_0 : i32, i32
  }
  func.func @transform_6(%arg0: i32, %arg1: i32) -> (i32, i32) {
    %c0_i32 = arith.constant 0 : i32
    %c0_i32_0 = arith.constant 0 : i32
    %c0_i32_1 = arith.constant 0 : i32
    return %c0_i32, %c0_i32_0 : i32, i32
  }
  func.func @transform_7(%arg0: i32, %arg1: i32) -> (i32, i32) {
    %c0_i32 = arith.constant 0 : i32
    %c0_i32_0 = arith.constant 0 : i32
    %c0_i32_1 = arith.constant 0 : i32
    return %c0_i32, %c0_i32_0 : i32, i32
  }
  func.func @transform_8(%arg0: i32, %arg1: i32) -> (i32, i32) {
    %c0_i32 = arith.constant 0 : i32
    %c0_i32_0 = arith.constant 0 : i32
    %c0_i32_1 = arith.constant 0 : i32
    return %c0_i32, %c0_i32_0 : i32, i32
  }
  func.func @transform_9(%arg0: i32, %arg1: i32) -> (i32, i32) {
    %c0_i32 = arith.constant 0 : i32
    %c0_i32_0 = arith.constant 0 : i32
    %c0_i32_1 = arith.constant 0 : i32
    return %c0_i32, %c0_i32_0 : i32, i32
  }
  func.func @transform_10(%arg0: i32, %arg1: i32) -> (i32, i32) {
    %c0_i32 = arith.constant 0 : i32
    %c0_i32_0 = arith.constant 0 : i32
    %c0_i32_1 = arith.constant 0 : i32
    return %c0_i32, %c0_i32_0 : i32, i32
  }
  func.func @transform_11(%arg0: i32, %arg1: i32) -> (i32, i32, i32) {
    %c0_i32 = arith.constant 0 : i32
    %c0_i32_0 = arith.constant 0 : i32
    return %arg0, %arg1, %c0_i32 : i32, i32, i32
  }
}

</mosaic_0001>

<llo_original>
// kernel: tpu_custom_call.1
$region0: #{tpu_custom_call.1}
  #allocation0 [shape = 'u32[]', space=smem, size = 0x4, offset = 0x4, fixed_abs, tag = 'smem constant byte address 0x4 - core index']
  #allocation1 [shape = 'u32[144,128]{1,0:T(1,128)}', space=vmem, size = 0x12000, scoped, tag = 'internal scratch']
  #allocation2 [shape = 'f32[8,32]{1,0:T(8,128)}', space=vmem, size = 0x1000, scoped, tag = 'scratch operand']
  %s0 = inlined_call_operand.hbm [shape: f32[2,8,32], index: 0, kind: input, shape index: {}]
  %s1 = inlined_call_operand.hbm [shape: f32[2,8,32], index: 1, kind: input, shape index: {}]
  %s2 = inlined_call_operand.hbm [shape: f32[2,1,8,8], index: 2, kind: input, shape index: {}]
  %s3 = inlined_call_operand.hbm [shape: bf16[32,32], index: 3, kind: input, shape index: {}]
  %s4 = inlined_call_operand.vmem [shape: f32[1,32], index: 4, kind: input, shape index: {}]
  %s5 = inlined_call_operand.vmem [shape: bf16[32,64], index: 5, kind: input, shape index: {}]
  %s6 = inlined_call_operand.vmem [shape: f32[1,64], index: 6, kind: input, shape index: {}]
  %s7 = inlined_call_operand.hbm [shape: bf16[32,32], index: 7, kind: input, shape index: {}]
  %s8 = inlined_call_operand.vmem [shape: f32[1,32], index: 8, kind: input, shape index: {}]
  %s9 = inlined_call_operand.vmem [shape: f32[1,32], index: 9, kind: input, shape index: {}]
  %s10 = inlined_call_operand.vmem [shape: f32[1,32], index: 10, kind: input, shape index: {}]
  %s11 = inlined_call_operand.hbm [shape: f32[2,8,32], index: 11, kind: output, shape index: {}]
  %s12 = sld [smem:[#allocation0]]
  $region97: #{tpu_custom_call.1} parent=0
    _
  %s14 = ssub.s32 1, %s12
  %s15 = scalar_select 0, %s14, %s12
  $region1: #{tpu_custom_call.1} parent=0
    #allocation3 [shape = 'u8[8192]{0}', space=vmem, size = 0x2000, scoped, tag = 'input window, operand 0']
    #allocation4 [shape = 's32[2]{0}', space=sflag, size = 0x8, scoped, tag = 'scoped memory for tpu_custom_call.1']
    #allocation5 [shape = 's32[2]{0}', space=sflag, size = 0x8, scoped, tag = 'scoped memory for tpu_custom_call.1']
    #allocation6 [shape = 'u8[8192]{0}', space=vmem, size = 0x2000, scoped, tag = 'input window, operand 1']
    #allocation7 [shape = 's32[2]{0}', space=sflag, size = 0x8, scoped, tag = 'scoped memory for tpu_custom_call.1']
    #allocation8 [shape = 'u8[8192]{0}', space=vmem, size = 0x2000, scoped, tag = 'input window, operand 2']
    #allocation9 [shape = 'u8[8192]{0}', space=vmem, size = 0x2000, scoped, tag = 'input window, operand 3, single buffered']
    #allocation10 [shape = 's32[1]{0}', space=sflag, size = 0x4, scoped, tag = 'scoped memory for tpu_custom_call.1']
    #allocation11 [shape = 'u8[8192]{0}', space=vmem, size = 0x2000, scoped, tag = 'input window, operand 7, single buffered']
    #allocation12 [shape = 'u8[8192]{0}', space=vmem, size = 0x2000, scoped, tag = 'output window, operand 0']
    %16 = vsyncpa [#allocation4], 0
    %s17 = scalar_lea.sflag [#allocation4], 1
    %18 = vsyncpa %s17, 0
    %19 = vsyncpa [#allocation7], 0
    %s20 = scalar_lea.sflag [#allocation7], 1
    %21 = vsyncpa %s20, 0
    %22 = vsyncpa [#allocation10], 0
    %23 = vsyncpa [#allocation5], 0
    %s24 = scalar_lea.sflag [#allocation5], 1
    %25 = vsyncpa %s24, 0
    loop: start=0, step=1, limit=4
    $region2: #{tpu_custom_call.1} parent=1 // loop_pre_header
      _
    $region3: #{tpu_custom_call.1} parent=1 // loop_header
      %s27 = sphi 0, %s31
      %p28 = scmp.ge.s32.totalorder %s27, 4
      %s34 = sphi 0, %s46
      %s35 = sphi 0, %s42
      %s36 = sphi 0, %s34
      %s37 = sphi 0, %s35
      %s38 = sphi 0, %s36
      %s39 = sphi 0, %s37
      %s51 = sphi 0, %s53
      %s54 = sphi 0, %s51
      %s55 = sphi 0, %s54
      %s71 = sphi 0, %s55
      %s77 = sphi 0, %s79
      %s80 = sphi 0, %s77
      %s81 = sphi 0, %s80
      %s97 = sphi 0, %s81
      %s105 = sphi 0, %s107
      %s108 = sphi 0, %s105
      %s109 = sphi 0, %s108
      %s125 = sphi 0, %s109
      %s129 = sphi 0, %s129
      %s131 = sphi 0, %s129
      %s132 = sphi 0, %s131
      %s146 = sphi 0, %s132
      %s150 = sphi 0, %s150
      %s152 = sphi 0, %s150
      %s153 = sphi 0, %s152
      %s167 = sphi 0, %s153
      %s171 = sphi 0, %s171
      %s173 = sphi 0, %s171
      %s174 = sphi 0, %s173
      %s188 = sphi 0, %s174
      %s192 = sphi 0, %s192
      %s194 = sphi 0, %s192
      %s195 = sphi 0, %s194
      %s209 = sphi 0, %s195
      %s213 = sphi 0, %s213
      %s215 = sphi 0, %s213
      %s216 = sphi 0, %s215
      %s230 = sphi 0, %s216
      %s234 = sphi 0, %s234
      %s236 = sphi 0, %s234
      %s237 = sphi 0, %s236
      %s251 = sphi 0, %s237
      %s255 = sphi 0, %s255
      %s257 = sphi 0, %s255
      %s258 = sphi 0, %s257
      %s272 = sphi 0, %s258
      %s276 = sphi 0, %s276
      %s278 = sphi 0, %s276
      %s279 = sphi 0, %s278
      %s293 = sphi 0, %s279
      %s301 = sphi 0, %s303
      %s304 = sphi 0, %s301
      %s305 = sphi 0, %s304
      %s321 = sphi 0, %s305
    $region4: #{tpu_custom_call.1} parent=1 // loop_header_branch
      %30 = sbr.rel (%p28) target = $region8
    $region5: #{tpu_custom_call.1} parent=1 // loop_body
      %s32 = ssub.s32 %s27, 1
      %s33 = ssub.s32 %s27, 2
      %s40 = sadd.s32 1, %s35
      %p41 = scmp.ge.s32.totalorder %s40, 1
      %s42 = scalar_select %p41, 0, %s40
      %s43 = sadd.s32 1, %s34
      %s44 = scalar_select %p41, %s43, %s34
      %p45 = scmp.ge.s32.totalorder %s44, 2
      %s46 = scalar_select %p45, 0, %s44
      %s47 = ssub.s32 %s34, %s46
      %s48 = ssub.s32 %s35, %s42
      %s49 = sor.u32 %s47, %s48
      %p50 = scmp.eq.s32.totalorder %s49, 0
      %s52 = sadd.s32 %s51, 1
      %s53 = scalar_select %p50, %s51, %s52
      %p56 = pneg %p50
      %p57 = scmp.eq.s32.totalorder %s27, 1
      %p58 = por %p56, %p57
      %p59 = scmp.ne.s32.totalorder %s51, %s54
      %p60 = scmp.eq.s32.totalorder %s27, 0
      %p61 = por %p59, %p60
      %p62 = scmp.ne.s32.totalorder %s51, %s54
      %p63 = scmp.eq.s32.totalorder %s32, 1
      %p64 = por %p62, %p63
      %p65 = scmp.ne.s32.totalorder %s54, %s55
      %p66 = scmp.eq.s32.totalorder %s32, 0
      %p67 = por %p65, %p66
      %p68 = scmp.ne.s32.totalorder %s54, %s55
      %p69 = scmp.eq.s32.totalorder %s33, 1
      %p70 = por %p68, %p69
      %p72 = scmp.ne.s32.totalorder %s55, %s71
      %p73 = scmp.eq.s32.totalorder %s33, 0
      %p74 = por %p72, %p73
      %s75 = ssub.s32 %s34, %s46
      %p76 = scmp.eq.s32.totalorder %s75, 0
      %s78 = sadd.s32 %s77, 1
      %s79 = scalar_select %p76, %s77, %s78
      %p82 = pneg %p76
      %p83 = scmp.eq.s32.totalorder %s27, 1
      %p84 = por %p82, %p83
      %p85 = scmp.ne.s32.totalorder %s77, %s80
      %p86 = scmp.eq.s32.totalorder %s27, 0
      %p87 = por %p85, %p86
      %p88 = scmp.ne.s32.totalorder %s77, %s80
      %p89 = scmp.eq.s32.totalorder %s32, 1
      %p90 = por %p88, %p89
      %p91 = scmp.ne.s32.totalorder %s80, %s81
      %p92 = scmp.eq.s32.totalorder %s32, 0
      %p93 = por %p91, %p92
      %p94 = scmp.ne.s32.totalorder %s80, %s81
      %p95 = scmp.eq.s32.totalorder %s33, 1
      %p96 = por %p94, %p95
      %p98 = scmp.ne.s32.totalorder %s81, %s97
      %p99 = scmp.eq.s32.totalorder %s33, 0
      %p100 = por %p98, %p99
      %s101 = ssub.s32 %s34, %s46
      %s102 = ssub.s32 %s35, %s42
      %s103 = sor.u32 %s101, %s102
      %p104 = scmp.eq.s32.totalorder %s103, 0
      %s106 = sadd.s32 %s105, 1
      %s107 = scalar_select %p104, %s105, %s106
      %p110 = pneg %p104
      %p111 = scmp.eq.s32.totalorder %s27, 1
      %p112 = por %p110, %p111
      %p113 = scmp.ne.s32.totalorder %s105, %s108
      %p114 = scmp.eq.s32.totalorder %s27, 0
      %p115 = por %p113, %p114
      %p116 = scmp.ne.s32.totalorder %s105, %s108
      %p117 = scmp.eq.s32.totalorder %s32, 1
      %p118 = por %p116, %p117
      %p119 = scmp.ne.s32.totalorder %s108, %s109
      %p120 = scmp.eq.s32.totalorder %s32, 0
      %p121 = por %p119, %p120
      %p122 = scmp.ne.s32.totalorder %s108, %s109
      %p123 = scmp.eq.s32.totalorder %s33, 1
      %p124 = por %p122, %p123
      %p126 = scmp.ne.s32.totalorder %s109, %s125
      %p127 = scmp.eq.s32.totalorder %s33, 0
      %p128 = por %p126, %p127
      %s130 = sadd.s32 %s129, 1
      %p133 = scmp.eq.s32.totalorder %s27, 1
      %p134 = scmp.ne.s32.totalorder %s129, %s131
      %p135 = scmp.eq.s32.totalorder %s27, 0
      %p136 = por %p134, %p135
      %p137 = scmp.ne.s32.totalorder %s129, %s131
      %p138 = scmp.eq.s32.totalorder %s32, 1
      %p139 = por %p137, %p138
      %p140 = scmp.ne.s32.totalorder %s131, %s132
      %p141 = scmp.eq.s32.totalorder %s32, 0
      %p142 = por %p140, %p141
      %p143 = scmp.ne.s32.totalorder %s131, %s132
      %p144 = scmp.eq.s32.totalorder %s33, 1
      %p145 = por %p143, %p144
      %p147 = scmp.ne.s32.totalorder %s132, %s146
      %p148 = scmp.eq.s32.totalorder %s33, 0
      %p149 = por %p147, %p148
      %s151 = sadd.s32 %s150, 1
      %p154 = scmp.eq.s32.totalorder %s27, 1
      %p155 = scmp.ne.s32.totalorder %s150, %s152
      %p156 = scmp.eq.s32.totalorder %s27, 0
      %p157 = por %p155, %p156
      %p158 = scmp.ne.s32.totalorder %s150, %s152
      %p159 = scmp.eq.s32.totalorder %s32, 1
      %p160 = por %p158, %p159
      %p161 = scmp.ne.s32.totalorder %s152, %s153
      %p162 = scmp.eq.s32.totalorder %s32, 0
      %p163 = por %p161, %p162
      %p164 = scmp.ne.s32.totalorder %s152, %s153
      %p165 = scmp.eq.s32.totalorder %s33, 1
      %p166 = por %p164, %p165
      %p168 = scmp.ne.s32.totalorder %s153, %s167
      %p169 = scmp.eq.s32.totalorder %s33, 0
      %p170 = por %p168, %p169
      %s172 = sadd.s32 %s171, 1
      %p175 = scmp.eq.s32.totalorder %s27, 1
      %p176 = scmp.ne.s32.totalorder %s171, %s173
      %p177 = scmp.eq.s32.totalorder %s27, 0
      %p178 = por %p176, %p177
      %p179 = scmp.ne.s32.totalorder %s171, %s173
      %p180 = scmp.eq.s32.totalorder %s32, 1
      %p181 = por %p179, %p180
      %p182 = scmp.ne.s32.totalorder %s173, %s174
      %p183 = scmp.eq.s32.totalorder %s32, 0
      %p184 = por %p182, %p183
      %p185 = scmp.ne.s32.totalorder %s173, %s174
      %p186 = scmp.eq.s32.totalorder %s33, 1
      %p187 = por %p185, %p186
      %p189 = scmp.ne.s32.totalorder %s174, %s188
      %p190 = scmp.eq.s32.totalorder %s33, 0
      %p191 = por %p189, %p190
      %s193 = sadd.s32 %s192, 1
      %p196 = scmp.eq.s32.totalorder %s27, 1
      %p197 = scmp.ne.s32.totalorder %s192, %s194
      %p198 = scmp.eq.s32.totalorder %s27, 0
      %p199 = por %p197, %p198
      %p200 = scmp.ne.s32.totalorder %s192, %s194
      %p201 = scmp.eq.s32.totalorder %s32, 1
      %p202 = por %p200, %p201
      %p203 = scmp.ne.s32.totalorder %s194, %s195
      %p204 = scmp.eq.s32.totalorder %s32, 0
      %p205 = por %p203, %p204
      %p206 = scmp.ne.s32.totalorder %s194, %s195
      %p207 = scmp.eq.s32.totalorder %s33, 1
      %p208 = por %p206, %p207
      %p210 = scmp.ne.s32.totalorder %s195, %s209
      %p211 = scmp.eq.s32.totalorder %s33, 0
      %p212 = por %p210, %p211
      %s214 = sadd.s32 %s213, 1
      %p217 = scmp.eq.s32.totalorder %s27, 1
      %p218 = scmp.ne.s32.totalorder %s213, %s215
      %p219 = scmp.eq.s32.totalorder %s27, 0
      %p220 = por %p218, %p219
      %p221 = scmp.ne.s32.totalorder %s213, %s215
      %p222 = scmp.eq.s32.totalorder %s32, 1
      %p223 = por %p221, %p222
      %p224 = scmp.ne.s32.totalorder %s215, %s216
      %p225 = scmp.eq.s32.totalorder %s32, 0
      %p226 = por %p224, %p225
      %p227 = scmp.ne.s32.totalorder %s215, %s216
      %p228 = scmp.eq.s32.totalorder %s33, 1
      %p229 = por %p227, %p228
      %p231 = scmp.ne.s32.totalorder %s216, %s230
      %p232 = scmp.eq.s32.totalorder %s33, 0
      %p233 = por %p231, %p232
      %s235 = sadd.s32 %s234, 1
      %p238 = scmp.eq.s32.totalorder %s27, 1
      %p239 = scmp.ne.s32.totalorder %s234, %s236
      %p240 = scmp.eq.s32.totalorder %s27, 0
      %p241 = por %p239, %p240
      %p242 = scmp.ne.s32.totalorder %s234, %s236
      %p243 = scmp.eq.s32.totalorder %s32, 1
      %p244 = por %p242, %p243
      %p245 = scmp.ne.s32.totalorder %s236, %s237
      %p246 = scmp.eq.s32.totalorder %s32, 0
      %p247 = por %p245, %p246
      %p248 = scmp.ne.s32.totalorder %s236, %s237
      %p249 = scmp.eq.s32.totalorder %s33, 1
      %p250 = por %p248, %p249
      %p252 = scmp.ne.s32.totalorder %s237, %s251
      %p253 = scmp.eq.s32.totalorder %s33, 0
      %p254 = por %p252, %p253
      %s256 = sadd.s32 %s255, 1
      %p259 = scmp.eq.s32.totalorder %s27, 1
      %p260 = scmp.ne.s32.totalorder %s255, %s257
      %p261 = scmp.eq.s32.totalorder %s27, 0
      %p262 = por %p260, %p261
      %p263 = scmp.ne.s32.totalorder %s255, %s257
      %p264 = scmp.eq.s32.totalorder %s32, 1
      %p265 = por %p263, %p264
      %p266 = scmp.ne.s32.totalorder %s257, %s258
      %p267 = scmp.eq.s32.totalorder %s32, 0
      %p268 = por %p266, %p267
      %p269 = scmp.ne.s32.totalorder %s257, %s258
      %p270 = scmp.eq.s32.totalorder %s33, 1
      %p271 = por %p269, %p270
      %p273 = scmp.ne.s32.totalorder %s258, %s272
      %p274 = scmp.eq.s32.totalorder %s33, 0
      %p275 = por %p273, %p274
      %s277 = sadd.s32 %s276, 1
      %p280 = scmp.eq.s32.totalorder %s27, 1
      %p281 = scmp.ne.s32.totalorder %s276, %s278
      %p282 = scmp.eq.s32.totalorder %s27, 0
      %p283 = por %p281, %p282
      %p284 = scmp.ne.s32.totalorder %s276, %s278
      %p285 = scmp.eq.s32.totalorder %s32, 1
      %p286 = por %p284, %p285
      %p287 = scmp.ne.s32.totalorder %s278, %s279
      %p288 = scmp.eq.s32.totalorder %s32, 0
      %p289 = por %p287, %p288
      %p290 = scmp.ne.s32.totalorder %s278, %s279
      %p291 = scmp.eq.s32.totalorder %s33, 1
      %p292 = por %p290, %p291
      %p294 = scmp.ne.s32.totalorder %s279, %s293
      %p295 = scmp.eq.s32.totalorder %s33, 0
      %p296 = por %p294, %p295
      %s297 = ssub.s32 %s34, %s46
      %s298 = ssub.s32 %s35, %s42
      %s299 = sor.u32 %s297, %s298
      %p300 = scmp.eq.s32.totalorder %s299, 0
      %s302 = sadd.s32 %s301, 1
      %s303 = scalar_select %p300, %s301, %s302
      %p306 = pneg %p300
      %p307 = scmp.eq.s32.totalorder %s27, 1
      %p308 = por %p306, %p307
      %p309 = scmp.ne.s32.totalorder %s301, %s304
      %p310 = scmp.eq.s32.totalorder %s27, 0
      %p311 = por %p309, %p310
      %p312 = scmp.ne.s32.totalorder %s301, %s304
      %p313 = scmp.eq.s32.totalorder %s32, 1
      %p314 = por %p312, %p313
      %p315 = scmp.ne.s32.totalorder %s304, %s305
      %p316 = scmp.eq.s32.totalorder %s32, 0
      %p317 = por %p315, %p316
      %p318 = scmp.ne.s32.totalorder %s304, %s305
      %p319 = scmp.eq.s32.totalorder %s33, 1
      %p320 = por %p318, %p319
      %p322 = scmp.ne.s32.totalorder %s305, %s321
      %p323 = scmp.eq.s32.totalorder %s33, 0
      %p324 = por %p322, %p323
      %p325 = scmp.le.s32.totalorder 1, %s27
      %p326 = scmp.lt.s32.totalorder %s27, 3
      %p327 = pnand %p325, %p326
      %p328 = pneg %p327
      // Predicated region
      $region9: #{tpu_custom_call.1} parent=5 // pred_check
        _
      $region10: #{tpu_custom_call.1} parent=5 // pred_check_branch
        %330 = sbr.rel (%p327) target = $region12
      $region11: #{tpu_custom_call.1} parent=5 // pred_region
        %s331 = ssub.s32 %s27, 1
        // Predicated region
        $region13: #{tpu_custom_call.1} parent=11 // pred_check
          %p332 = pneg %p142
        $region14: #{tpu_custom_call.1} parent=11 // pred_check_branch
          %334 = sbr.rel (%p332) target = $region16
        $region15: #{tpu_custom_call.1} parent=11 // pred_region
          %s336 = ssub.s32 256, 256
          %337 = vsyncadd [#allocation10], %s336
          %s338 = sshll.u32 [#allocation9], 4
          %s339 = int_to_ptr.vmem [resolvable:$true] %s338
          %344 = dma.hbm_to_vmem [thread:$0]  %s3, 256, %s339, [#allocation10], 64, 64, 4
        $region16: #{tpu_custom_call.1} parent=11 // pred_fallthru
          _
        // Predicated region
        $region17: #{tpu_custom_call.1} parent=11 // pred_check
          %p345 = pneg %p163
        $region18: #{tpu_custom_call.1} parent=11 // pred_check_branch
          %347 = sbr.rel (%p345) target = $region20
        $region19: #{tpu_custom_call.1} parent=11 // pred_region
          _
        $region20: #{tpu_custom_call.1} parent=11 // pred_fallthru
          _
        // Predicated region
        $region21: #{tpu_custom_call.1} parent=11 // pred_check
          %p348 = pneg %p184
        $region22: #{tpu_custom_call.1} parent=11 // pred_check_branch
          %350 = sbr.rel (%p348) target = $region24
        $region23: #{tpu_custom_call.1} parent=11 // pred_region
          _
        $region24: #{tpu_custom_call.1} parent=11 // pred_fallthru
          _
        // Predicated region
        $region25: #{tpu_custom_call.1} parent=11 // pred_check
          %p351 = pneg %p205
        $region26: #{tpu_custom_call.1} parent=11 // pred_check_branch
          %353 = sbr.rel (%p351) target = $region28
        $region27: #{tpu_custom_call.1} parent=11 // pred_region
          _
        $region28: #{tpu_custom_call.1} parent=11 // pred_fallthru
          _
        // Predicated region
        $region29: #{tpu_custom_call.1} parent=11 // pred_check
          %p354 = pneg %p226
        $region30: #{tpu_custom_call.1} parent=11 // pred_check_branch
          %356 = sbr.rel (%p354) target = $region32
        $region31: #{tpu_custom_call.1} parent=11 // pred_region
          %s358 = ssub.s32 256, 256
          %359 = vsyncadd [#allocation10], %s358
          %s360 = sshll.u32 [#allocation11], 4
          %s361 = int_to_ptr.vmem [resolvable:$true] %s360
          %366 = dma.hbm_to_vmem [thread:$0]  %s7, 256, %s361, [#allocation10], 64, 64, 4
        $region32: #{tpu_custom_call.1} parent=11 // pred_fallthru
          _
        // Predicated region
        $region33: #{tpu_custom_call.1} parent=11 // pred_check
          %p367 = pneg %p247
        $region34: #{tpu_custom_call.1} parent=11 // pred_check_branch
          %369 = sbr.rel (%p367) target = $region36
        $region35: #{tpu_custom_call.1} parent=11 // pred_region
          _
        $region36: #{tpu_custom_call.1} parent=11 // pred_fallthru
          _
        // Predicated region
        $region37: #{tpu_custom_call.1} parent=11 // pred_check
          %p370 = pneg %p268
        $region38: #{tpu_custom_call.1} parent=11 // pred_check_branch
          %372 = sbr.rel (%p370) target = $region40
        $region39: #{tpu_custom_call.1} parent=11 // pred_region
          _
        $region40: #{tpu_custom_call.1} parent=11 // pred_fallthru
          _
        // Predicated region
        $region41: #{tpu_custom_call.1} parent=11 // pred_check
          %p373 = pneg %p289
        $region42: #{tpu_custom_call.1} parent=11 // pred_check_branch
          %375 = sbr.rel (%p373) target = $region44
        $region43: #{tpu_custom_call.1} parent=11 // pred_region
          _
        $region44: #{tpu_custom_call.1} parent=11 // pred_fallthru
          _
      $region12: #{tpu_custom_call.1} parent=5 // pred_fallthru
        _
      %p376 = scmp.lt.s32.totalorder %s27, 2
      // Predicated region
      $region45: #{tpu_custom_call.1} parent=5 // pred_check
        %p377 = pneg %p376
      $region46: #{tpu_custom_call.1} parent=5 // pred_check_branch
        %379 = sbr.rel (%p377) target = $region48
      $region47: #{tpu_custom_call.1} parent=5 // pred_region
        // Predicated region
        $region49: #{tpu_custom_call.1} parent=47 // pred_check
          %p380 = pneg %p61
        $region50: #{tpu_custom_call.1} parent=47 // pred_check_branch
          %382 = sbr.rel (%p380) target = $region52
        $region51: #{tpu_custom_call.1} parent=47 // pred_region
          %s383 = sand.u32 %s51, 1
          %s384 = scalar_lea.sflag [#allocation4], %s383
          %s385 = sand.u32 %s51, 1
          %s386 = smul.addr %s385, 8
          %s387 = scalar_lea.vmem [#allocation3], %s386
          %s389 = ssub.s32 128, 128
          %390 = vsyncadd %s384, %s389
          %s391 = sadd.s32 %s35, %s34
          %s392 = smul.addr %s391, 128
          %s393 = scalar_lea.hbm %s0, %s392
          %s395 = sshll.u32 %s387, 4
          %s396 = int_to_ptr.vmem [resolvable:$true] %s395
          %398 = dma.hbm_to_vmem [thread:$0]  %s393, 128, %s396, %s384
        $region52: #{tpu_custom_call.1} parent=47 // pred_fallthru
          _
        // Predicated region
        $region53: #{tpu_custom_call.1} parent=47 // pred_check
          %p399 = pneg %p87
        $region54: #{tpu_custom_call.1} parent=47 // pred_check_branch
          %401 = sbr.rel (%p399) target = $region56
        $region55: #{tpu_custom_call.1} parent=47 // pred_region
          %s402 = sand.u32 %s27, 1
          %s403 = scalar_lea.sflag [#allocation7], %s402
          %s404 = sand.u32 %s77, 1
          %s405 = smul.addr %s404, 8
          %s406 = scalar_lea.vmem [#allocation6], %s405
          %s408 = ssub.s32 128, 128
          %409 = vsyncadd %s403, %s408
          %s410 = smul.addr %s34, 128
          %s411 = scalar_lea.hbm %s1, %s410
          %s413 = sshll.u32 %s406, 4
          %s414 = int_to_ptr.vmem [resolvable:$true] %s413
          %416 = dma.hbm_to_vmem [thread:$0]  %s411, 128, %s414, %s403
        $region56: #{tpu_custom_call.1} parent=47 // pred_fallthru
          _
        // Predicated region
        $region57: #{tpu_custom_call.1} parent=47 // pred_check
          %p417 = pneg %p115
        $region58: #{tpu_custom_call.1} parent=47 // pred_check_branch
          %419 = sbr.rel (%p417) target = $region60
        $region59: #{tpu_custom_call.1} parent=47 // pred_region
          %s420 = sand.u32 %s27, 1
          %s421 = scalar_lea.sflag [#allocation7], %s420
          %s422 = sand.u32 %s105, 1
          %s423 = smul.addr %s422, 8
          %s424 = scalar_lea.vmem [#allocation8], %s423
          %s426 = ssub.s32 128, 128
          %427 = vsyncadd %s421, %s426
          %s428 = sadd.s32 %s35, %s34
          %s429 = smul.addr %s428, 128
          %s430 = scalar_lea.hbm %s2, %s429
          %s432 = sshll.u32 %s424, 4
          %s433 = int_to_ptr.vmem [resolvable:$true] %s432
          %435 = dma.hbm_to_vmem [thread:$0]  %s430, 128, %s433, %s421
        $region60: #{tpu_custom_call.1} parent=47 // pred_fallthru
          _
      $region48: #{tpu_custom_call.1} parent=5 // pred_fallthru
        _
      %p436 = scmp.le.s32.totalorder 1, %s27
      %p437 = scmp.lt.s32.totalorder %s27, 3
      %p438 = pnand %p436, %p437
      %p439 = pneg %p438
      // Predicated region
      $region61: #{tpu_custom_call.1} parent=5 // pred_check
        _
      $region62: #{tpu_custom_call.1} parent=5 // pred_check_branch
        %441 = sbr.rel (%p438) target = $region64
      $region63: #{tpu_custom_call.1} parent=5 // pred_region
        %s442 = ssub.s32 %s27, 1
        %s443 = sand.u32 %s54, 1
        %s444 = scalar_lea.sflag [#allocation4], %s443
        %s445 = sand.u32 %s54, 1
        %s446 = smul.addr %s445, 8
        %s447 = scalar_lea.vmem [#allocation3], %s446
        // Predicated region
        $region65: #{tpu_custom_call.1} parent=63 // pred_check
          %p448 = pneg %p67
        $region66: #{tpu_custom_call.1} parent=63 // pred_check_branch
          %450 = sbr.rel (%p448) target = $region68
        $region67: #{tpu_custom_call.1} parent=63 // pred_region
          %451 = dma.done %s444, 128
        $region68: #{tpu_custom_call.1} parent=63 // pred_fallthru
          _
        %s452 = sand.u32 %s32, 1
        %s453 = scalar_lea.sflag [#allocation7], %s452
        %s454 = sand.u32 %s80, 1
        %s455 = smul.addr %s454, 8
        %s456 = scalar_lea.vmem [#allocation6], %s455
        // Predicated region
        $region69: #{tpu_custom_call.1} parent=63 // pred_check
          %p457 = pneg %p93
        $region70: #{tpu_custom_call.1} parent=63 // pred_check_branch
          %459 = sbr.rel (%p457) target = $region72
        $region71: #{tpu_custom_call.1} parent=63 // pred_region
          %460 = dma.done %s453, 128
        $region72: #{tpu_custom_call.1} parent=63 // pred_fallthru
          _
        %s461 = sand.u32 %s32, 1
        %s462 = scalar_lea.sflag [#allocation7], %s461
        %s463 = sand.u32 %s108, 1
        %s464 = smul.addr %s463, 8
        %s465 = scalar_lea.vmem [#allocation8], %s464
        // Predicated region
        $region73: #{tpu_custom_call.1} parent=63 // pred_check
          %p466 = pneg %p121
        $region74: #{tpu_custom_call.1} parent=63 // pred_check_branch
          %468 = sbr.rel (%p466) target = $region76
        $region75: #{tpu_custom_call.1} parent=63 // pred_region
          %469 = dma.done %s462, 128
        $region76: #{tpu_custom_call.1} parent=63 // pred_fallthru
          _
        // Predicated region
        $region77: #{tpu_custom_call.1} parent=63 // pred_check
          %p470 = pneg %p142
        $region78: #{tpu_custom_call.1} parent=63 // pred_check_branch
          %472 = sbr.rel (%p470) target = $region80
        $region79: #{tpu_custom_call.1} parent=63 // pred_region
          %473 = dma.done [#allocation10], 256
        $region80: #{tpu_custom_call.1} parent=63 // pred_fallthru
          _
        // Predicated region
        $region81: #{tpu_custom_call.1} parent=63 // pred_check
          %p474 = pneg %p226
        $region82: #{tpu_custom_call.1} parent=63 // pred_check_branch
          %476 = sbr.rel (%p474) target = $region84
        $region83: #{tpu_custom_call.1} parent=63 // pred_region
          %477 = dma.done [#allocation10], 256
        $region84: #{tpu_custom_call.1} parent=63 // pred_fallthru
          _
        %s478 = sand.u32 %s54, 1
        %s479 = scalar_lea.sflag [#allocation4], %s478
        %s480 = sand.u32 %s54, 1
        %s481 = smul.addr %s480, 8
        %s482 = scalar_lea.vmem [#allocation3], %s481
        %p483 = pneg %p67
        %p484 = pneg %p64
        %s485 = sand.u32 %s32, 1
        %s486 = scalar_lea.sflag [#allocation7], %s485
        %s487 = sand.u32 %s80, 1
        %s488 = smul.addr %s487, 8
        %s489 = scalar_lea.vmem [#allocation6], %s488
        %p490 = pneg %p93
        %p491 = pneg %p90
        %s492 = sand.u32 %s32, 1
        %s493 = scalar_lea.sflag [#allocation7], %s492
        %s494 = sand.u32 %s108, 1
        %s495 = smul.addr %s494, 8
        %s496 = scalar_lea.vmem [#allocation8], %s495
        %p497 = pneg %p121
        %p498 = pneg %p118
        %p499 = pneg %p142
        %p500 = pneg %p139
        %p501 = pneg %p163
        %p502 = pneg %p160
        %p503 = pneg %p184
        %p504 = pneg %p181
        %p505 = pneg %p205
        %p506 = pneg %p202
        %p507 = pneg %p226
        %p508 = pneg %p223
        %p509 = pneg %p247
        %p510 = pneg %p244
        %p511 = pneg %p268
        %p512 = pneg %p265
        %p513 = pneg %p289
        %p514 = pneg %p286
        %p515 = pneg %p317
        %p516 = pneg %p314
        %s517 = sand.u32 %s304, 1
        %s518 = scalar_lea.sflag [#allocation5], %s517
        %s519 = sand.u32 %s304, 1
        %s520 = smul.addr %s519, 8
        %s521 = scalar_lea.vmem [#allocation12], %s520
        %v523 = vld [vmem:[%s447] sm:$0xff]
        %v524 = vld [vmem:[%s456] sm:$0xff]
        %v525 = vld [vmem:[%s465] sm:$0xff]
        %v526 = vpack.c.bf16 %v523, %v523
        %v527 = vld [vmem:[#allocation9] sm:$0xf]
        %v528 = vld [vmem:[#allocation9 + $0x4] sm:$0xf]
        %v529 = vld [vmem:[#allocation9 + $0x8] sm:$0xf]
        %v530 = vld [vmem:[#allocation9 + $0xc] sm:$0xf]
        %v531 = vld [vmem:[%s4] sm:$0x1]
        %v533 = vlaneseq
        %v534 = vshrl.u32 %v533, 7
        %v535 = vsub.s32 0, %v534
        %v536 = vrot.slane %v531, %v535
        %v542 = vunpack.c.l.b16 %v527
        %v543 = vunpack.c.l.b16 %v528
        %v544 = vunpack.c.l.b16 %v529
        %v545 = vunpack.c.l.b16 %v530
        %v546 = vpack.c.b16 %v543, %v542
        %v547 = vpack.c.b16 %v545, %v544
        %vm550 = vcmask 261120
        %v552 = vsel %vm550, %v526, 0
        %554 = vmatprep.subr.bf16.mxu0 0
        %555 = vmatpush1.bf16.msra.mxu0 %v546
        %556 = vmatprep.subr.bf16.mxu0 0
        %557 = vmatpush1.bf16.msra.mxu0 %v547
        %558 = vmatprep.subr.bf16.mxu0 0
        %559 = vmatpush1.bf16.msra.mxu0 0
        %560 = vmatprep.subr.bf16.mxu0 0
        %561 = vmatpush1.bf16.msra.mxu0 0
        %562 = vmatprep.subr.bf16.mxu0 0
        %563 = vmatpush1.bf16.msra.mxu0 0
        %564 = vmatprep.subr.bf16.mxu0 0
        %565 = vmatpush1.bf16.msra.mxu0 0
        %566 = vmatprep.subr.bf16.mxu0 0
        %567 = vmatpush1.bf16.msra.mxu0 0
        %568 = vmatprep.subr.bf16.mxu0 0
        %569 = vmatpush1.bf16.msra.mxu0 0
        %570 = vmatprep.subr.bf16.mxu0 0
        %571 = vmatpush1.bf16.msra.mxu0 0
        %572 = vmatprep.subr.bf16.mxu0 0
        %573 = vmatpush1.bf16.msra.mxu0 0
        %574 = vmatprep.subr.bf16.mxu0 0
        %575 = vmatpush1.bf16.msra.mxu0 0
        %576 = vmatprep.subr.bf16.mxu0 0
        %577 = vmatpush1.bf16.msra.mxu0 0
        %578 = vmatprep.subr.bf16.mxu0 0
        %579 = vmatpush1.bf16.msra.mxu0 0
        %580 = vmatprep.subr.bf16.mxu0 0
        %581 = vmatpush1.bf16.msra.mxu0 0
        %582 = vmatprep.subr.bf16.mxu0 0
        %583 = vmatpush1.bf16.msra.mxu0 0
        %584 = vmatprep.subr.bf16.mxu0 0
        %585 = vmatpush1.bf16.msra.mxu0 0
        %586 = vmatprep.mubr.bf16.mxu0 0
        %587 = vmatmul.mubr.bf16.gmra.mrb[0].mxu0 %v552
        %v588 = vpop.f32.mrb[0].mxu0
        %v589 = vadd.f32 %v536, %v588
        %v590 = vpop.f32.mrb[0].mxu0
        %v591 = vpop.f32.mrb[0].mxu0
        %v592 = vpop.f32.mrb[0].mxu0
        %593 = vdwg.mxu0
        %v594 = vpack.c.bf16 %v524, %v524
        %v595 = vld [vmem:[%s5] sm:$0xf]
        %v596 = vld [vmem:[%s5 + $0x4] sm:$0xf]
        %v597 = vld [vmem:[%s5 + $0x8] sm:$0xf]
        %v598 = vld [vmem:[%s5 + $0xc] sm:$0xf]
        %v599 = vld [vmem:[%s6] sm:$0x1]
        %v601 = vlaneseq
        %v602 = vshrl.u32 %v601, 7
        %v603 = vsub.s32 0, %v602
        %v604 = vrot.slane %v599, %v603
        %v610 = vunpack.c.l.b16 %v595
        %v611 = vunpack.c.l.b16 %v596
        %v612 = vunpack.c.l.b16 %v597
        %v613 = vunpack.c.l.b16 %v598
        %v614 = vpack.c.b16 %v611, %v610
        %v615 = vpack.c.b16 %v613, %v612
        %v619 = vsel %vm550, %v594, 0
        %621 = vmatprep.subr.bf16.mxu0 0
        %622 = vmatpush1.bf16.msra.mxu0 %v614
        %623 = vmatprep.subr.bf16.mxu0 0
        %624 = vmatpush1.bf16.msra.mxu0 %v615
        %625 = vmatprep.subr.bf16.mxu0 0
        %626 = vmatpush1.bf16.msra.mxu0 0
        %627 = vmatprep.subr.bf16.mxu0 0
        %628 = vmatpush1.bf16.msra.mxu0 0
        %629 = vmatprep.subr.bf16.mxu0 0
        %630 = vmatpush1.bf16.msra.mxu0 0
        %631 = vmatprep.subr.bf16.mxu0 0
        %632 = vmatpush1.bf16.msra.mxu0 0
        %633 = vmatprep.subr.bf16.mxu0 0
        %634 = vmatpush1.bf16.msra.mxu0 0
        %635 = vmatprep.subr.bf16.mxu0 0
        %636 = vmatpush1.bf16.msra.mxu0 0
        %637 = vmatprep.subr.bf16.mxu0 0
        %638 = vmatpush1.bf16.msra.mxu0 0
        %639 = vmatprep.subr.bf16.mxu0 0
        %640 = vmatpush1.bf16.msra.mxu0 0
        %641 = vmatprep.subr.bf16.mxu0 0
        %642 = vmatpush1.bf16.msra.mxu0 0
        %643 = vmatprep.subr.bf16.mxu0 0
        %644 = vmatpush1.bf16.msra.mxu0 0
        %645 = vmatprep.subr.bf16.mxu0 0
        %646 = vmatpush1.bf16.msra.mxu0 0
        %647 = vmatprep.subr.bf16.mxu0 0
        %648 = vmatpush1.bf16.msra.mxu0 0
        %649 = vmatprep.subr.bf16.mxu0 0
        %650 = vmatpush1.bf16.msra.mxu0 0
        %651 = vmatprep.subr.bf16.mxu0 0
        %652 = vmatpush1.bf16.msra.mxu0 0
        %653 = vmatprep.mubr.bf16.mxu0 0
        %654 = vmatmul.mubr.bf16.gmra.mrb[0].mxu0 %v619
        %v655 = vpop.f32.mrb[0].mxu0
        %v656 = vadd.f32 %v604, %v655
        %v657 = vpop.f32.mrb[0].mxu0
        %v658 = vpop.f32.mrb[0].mxu0
        %v659 = vpop.f32.mrb[0].mxu0
        %660 = vdwg.mxu0
        %v661 = vpack.c.bf16 %v589, %v589
        %v662 = vpack.c.bf16 %v656, %v656
        %vm663 = vcmask 64512
        %v665 = vsel %vm663, %v661, 0
        %v668 = vsel %vm663, %v662, 0
        %670 = vmatprep.subr.bf16.mxu0 0
        %671 = vmatpush1.bf16.xpose.msra.mxu0 %v668
        %672 = vmatprep.subr.bf16.mxu0 0
        %673 = vmatpush1.bf16.xpose.msra.mxu0 0
        %674 = vmatprep.subr.bf16.mxu0 0
        %675 = vmatpush1.bf16.xpose.msra.mxu0 0
        %676 = vmatprep.subr.bf16.mxu0 0
        %677 = vmatpush1.bf16.xpose.msra.mxu0 0
        %678 = vmatprep.subr.bf16.mxu0 0
        %679 = vmatpush1.bf16.xpose.msra.mxu0 0
        %680 = vmatprep.subr.bf16.mxu0 0
        %681 = vmatpush1.bf16.xpose.msra.mxu0 0
        %682 = vmatprep.subr.bf16.mxu0 0
        %683 = vmatpush1.bf16.xpose.msra.mxu0 0
        %684 = vmatprep.subr.bf16.mxu0 0
        %685 = vmatpush1.bf16.xpose.msra.mxu0 0
        %686 = vmatprep.subr.bf16.mxu0 0
        %687 = vmatpush1.bf16.xpose.msra.mxu0 0
        %688 = vmatprep.subr.bf16.mxu0 0
        %689 = vmatpush1.bf16.xpose.msra.mxu0 0
        %690 = vmatprep.subr.bf16.mxu0 0
        %691 = vmatpush1.bf16.xpose.msra.mxu0 0
        %692 = vmatprep.subr.bf16.mxu0 0
        %693 = vmatpush1.bf16.xpose.msra.mxu0 0
        %694 = vmatprep.subr.bf16.mxu0 0
        %695 = vmatpush1.bf16.xpose.msra.mxu0 0
        %696 = vmatprep.subr.bf16.mxu0 0
        %697 = vmatpush1.bf16.xpose.msra.mxu0 0
        %698 = vmatprep.subr.bf16.mxu0 0
        %699 = vmatpush1.bf16.xpose.msra.mxu0 0
        %700 = vmatprep.subr.bf16.mxu0 0
        %701 = vmatpush1.bf16.xpose.msra.mxu0 0
        %702 = vmatprep.mubr.bf16.mxu0 0
        %703 = vmatmul.mubr.bf16.gmra.mrb[0].mxu0 %v665
        %v704 = vpop.f32.mrb[0].mxu0
        %v705 = vadd.f32 %v525, %v704
        %v706 = vpop.f32.mrb[0].mxu0
        %v707 = vpop.f32.mrb[0].mxu0
        %v708 = vpop.f32.mrb[0].mxu0
        %709 = vdwg.mxu0
        %v710 = vsel %vm663, %v705, -inf
        %711 = vmax.xlane.f32.xlu0 %v710
        %v712 = vpop.xlane.xlu0 %711
        %v713 = vsub.f32 %v705, %v712
        %v714 = vmul.f32 %v713, 1.442695
        %v715 = vpow.pop %v714
        %v716 = vsel %vm663, %v715, 0.0
        %717 = vadd.xlane.f32.xlu0 %v716
        %v718 = vpop.xlane.xlu0 %717
        %v719 = vrcp.pop %v718
        %v720 = vmul.f32 %v715, %v719
        %v721 = vpack.c.bf16 %v720, %v720
        %723 = vrot.lane.b32.xlu0 %v662, 96
        %v724 = vpop.permute.xlu0 %723
        %v726 = vsel %vm663, %v721, 0
        %vm728 = vcmask 1043456
        %v730 = vsel %vm728, %v724, 0
        %732 = vmatprep.subr.bf16.mxu0 0
        %733 = vmatpush1.bf16.msra.mxu0 %v730
        %734 = vmatprep.subr.bf16.mxu0 0
        %735 = vmatpush1.bf16.msra.mxu0 0
        %736 = vmatprep.subr.bf16.mxu0 0
        %737 = vmatpush1.bf16.msra.mxu0 0
        %738 = vmatprep.subr.bf16.mxu0 0
        %739 = vmatpush1.bf16.msra.mxu0 0
        %740 = vmatprep.subr.bf16.mxu0 0
        %741 = vmatpush1.bf16.msra.mxu0 0
        %742 = vmatprep.subr.bf16.mxu0 0
        %743 = vmatpush1.bf16.msra.mxu0 0
        %744 = vmatprep.subr.bf16.mxu0 0
        %745 = vmatpush1.bf16.msra.mxu0 0
        %746 = vmatprep.subr.bf16.mxu0 0
        %747 = vmatpush1.bf16.msra.mxu0 0
        %748 = vmatprep.subr.bf16.mxu0 0
        %749 = vmatpush1.bf16.msra.mxu0 0
        %750 = vmatprep.subr.bf16.mxu0 0
        %751 = vmatpush1.bf16.msra.mxu0 0
        %752 = vmatprep.subr.bf16.mxu0 0
        %753 = vmatpush1.bf16.msra.mxu0 0
        %754 = vmatprep.subr.bf16.mxu0 0
        %755 = vmatpush1.bf16.msra.mxu0 0
        %756 = vmatprep.subr.bf16.mxu0 0
        %757 = vmatpush1.bf16.msra.mxu0 0
        %758 = vmatprep.subr.bf16.mxu0 0
        %759 = vmatpush1.bf16.msra.mxu0 0
        %760 = vmatprep.subr.bf16.mxu0 0
        %761 = vmatpush1.bf16.msra.mxu0 0
        %762 = vmatprep.subr.bf16.mxu0 0
        %763 = vmatpush1.bf16.msra.mxu0 0
        %764 = vmatprep.mubr.bf16.mxu0 0
        %765 = vmatmul.mubr.bf16.gmra.mrb[0].mxu0 %v726
        %v766 = vpop.f32.mrb[0].mxu0
        %v767 = vadd.f32 0.0, %v766
        %v768 = vpop.f32.mrb[0].mxu0
        %v769 = vpop.f32.mrb[0].mxu0
        %v770 = vpop.f32.mrb[0].mxu0
        %771 = vdwg.mxu0
        %772 = vst.msk [vmem:[#allocation2] sm:$0xff] %vm663, %v767
        %774 = vrot.lane.b32.xlu0 %v661, 120
        %v775 = vpop.permute.xlu0 %774
        %776 = vrot.lane.b32.xlu0 %v662, 120
        %v777 = vpop.permute.xlu0 %776
        %v779 = vsel %vm663, %v775, 0
        %v782 = vsel %vm663, %v777, 0
        %784 = vmatprep.subr.bf16.mxu0 0
        %785 = vmatpush1.bf16.xpose.msra.mxu0 %v782
        %786 = vmatprep.subr.bf16.mxu0 0
        %787 = vmatpush1.bf16.xpose.msra.mxu0 0
        %788 = vmatprep.subr.bf16.mxu0 0
        %789 = vmatpush1.bf16.xpose.msra.mxu0 0
        %790 = vmatprep.subr.bf16.mxu0 0
        %791 = vmatpush1.bf16.xpose.msra.mxu0 0
        %792 = vmatprep.subr.bf16.mxu0 0
        %793 = vmatpush1.bf16.xpose.msra.mxu0 0
        %794 = vmatprep.subr.bf16.mxu0 0
        %795 = vmatpush1.bf16.xpose.msra.mxu0 0
        %796 = vmatprep.subr.bf16.mxu0 0
        %797 = vmatpush1.bf16.xpose.msra.mxu0 0
        %798 = vmatprep.subr.bf16.mxu0 0
        %799 = vmatpush1.bf16.xpose.msra.mxu0 0
        %800 = vmatprep.subr.bf16.mxu0 0
        %801 = vmatpush1.bf16.xpose.msra.mxu0 0
        %802 = vmatprep.subr.bf16.mxu0 0
        %803 = vmatpush1.bf16.xpose.msra.mxu0 0
        %804 = vmatprep.subr.bf16.mxu0 0
        %805 = vmatpush1.bf16.xpose.msra.mxu0 0
        %806 = vmatprep.subr.bf16.mxu0 0
        %807 = vmatpush1.bf16.xpose.msra.mxu0 0
        %808 = vmatprep.subr.bf16.mxu0 0
        %809 = vmatpush1.bf16.xpose.msra.mxu0 0
        %810 = vmatprep.subr.bf16.mxu0 0
        %811 = vmatpush1.bf16.xpose.msra.mxu0 0
        %812 = vmatprep.subr.bf16.mxu0 0
        %813 = vmatpush1.bf16.xpose.msra.mxu0 0
        %814 = vmatprep.subr.bf16.mxu0 0
        %815 = vmatpush1.bf16.xpose.msra.mxu0 0
        %816 = vmatprep.mubr.bf16.mxu0 0
        %817 = vmatmul.mubr.bf16.gmra.mrb[0].mxu0 %v779
        %v818 = vpop.f32.mrb[0].mxu0
        %v819 = vadd.f32 %v525, %v818
        %v820 = vpop.f32.mrb[0].mxu0
        %v821 = vpop.f32.mrb[0].mxu0
        %v822 = vpop.f32.mrb[0].mxu0
        %823 = vdwg.mxu0
        %v824 = vsel %vm663, %v819, -inf
        %825 = vmax.xlane.f32.xlu0 %v824
        %v826 = vpop.xlane.xlu0 %825
        %v827 = vsub.f32 %v819, %v826
        %v828 = vmul.f32 %v827, 1.442695
        %v829 = vpow.pop %v828
        %v830 = vsel %vm663, %v829, 0.0
        %831 = vadd.xlane.f32.xlu0 %v830
        %v832 = vpop.xlane.xlu0 %831
        %v833 = vrcp.pop %v832
        %v834 = vmul.f32 %v829, %v833
        %v835 = vpack.c.bf16 %v834, %v834
        %836 = vrot.lane.b32.xlu0 %v662, 88
        %v837 = vpop.permute.xlu0 %836
        %v839 = vsel %vm663, %v835, 0
        %v842 = vsel %vm728, %v837, 0
        %844 = vmatprep.subr.bf16.mxu0 0
        %845 = vmatpush1.bf16.msra.mxu0 %v842
        %846 = vmatprep.subr.bf16.mxu0 0
        %847 = vmatpush1.bf16.msra.mxu0 0
        %848 = vmatprep.subr.bf16.mxu0 0
        %849 = vmatpush1.bf16.msra.mxu0 0
        %850 = vmatprep.subr.bf16.mxu0 0
        %851 = vmatpush1.bf16.msra.mxu0 0
        %852 = vmatprep.subr.bf16.mxu0 0
        %853 = vmatpush1.bf16.msra.mxu0 0
        %854 = vmatprep.subr.bf16.mxu0 0
        %855 = vmatpush1.bf16.msra.mxu0 0
        %856 = vmatprep.subr.bf16.mxu0 0
        %857 = vmatpush1.bf16.msra.mxu0 0
        %858 = vmatprep.subr.bf16.mxu0 0
        %859 = vmatpush1.bf16.msra.mxu0 0
        %860 = vmatprep.subr.bf16.mxu0 0
        %861 = vmatpush1.bf16.msra.mxu0 0
        %862 = vmatprep.subr.bf16.mxu0 0
        %863 = vmatpush1.bf16.msra.mxu0 0
        %864 = vmatprep.subr.bf16.mxu0 0
        %865 = vmatpush1.bf16.msra.mxu0 0
        %866 = vmatprep.subr.bf16.mxu0 0
        %867 = vmatpush1.bf16.msra.mxu0 0
        %868 = vmatprep.subr.bf16.mxu0 0
        %869 = vmatpush1.bf16.msra.mxu0 0
        %870 = vmatprep.subr.bf16.mxu0 0
        %871 = vmatpush1.bf16.msra.mxu0 0
        %872 = vmatprep.subr.bf16.mxu0 0
        %873 = vmatpush1.bf16.msra.mxu0 0
        %874 = vmatprep.subr.bf16.mxu0 0
        %875 = vmatpush1.bf16.msra.mxu0 0
        %876 = vmatprep.mubr.bf16.mxu0 0
        %877 = vmatmul.mubr.bf16.gmra.mrb[0].mxu0 %v839
        %v878 = vpop.f32.mrb[0].mxu0
        %v879 = vadd.f32 0.0, %v878
        %v880 = vpop.f32.mrb[0].mxu0
        %v881 = vpop.f32.mrb[0].mxu0
        %v882 = vpop.f32.mrb[0].mxu0
        %883 = vdwg.mxu0
        %885 = vrot.lane.b32.xlu0 %v879, 8
        %v886 = vpop.permute.xlu0 %885
        %vm888 = vcmask 130112
        %889 = vst.msk [vmem:[#allocation2] sm:$0xff] %vm888, %v886
        %890 = vrot.lane.b32.xlu0 %v661, 112
        %v891 = vpop.permute.xlu0 %890
        %892 = vrot.lane.b32.xlu0 %v662, 112
        %v893 = vpop.permute.xlu0 %892
        %v895 = vsel %vm663, %v891, 0
        %v898 = vsel %vm663, %v893, 0
        %900 = vmatprep.subr.bf16.mxu0 0
        %901 = vmatpush1.bf16.xpose.msra.mxu0 %v898
        %902 = vmatprep.subr.bf16.mxu0 0
        %903 = vmatpush1.bf16.xpose.msra.mxu0 0
        %904 = vmatprep.subr.bf16.mxu0 0
        %905 = vmatpush1.bf16.xpose.msra.mxu0 0
        %906 = vmatprep.subr.bf16.mxu0 0
        %907 = vmatpush1.bf16.xpose.msra.mxu0 0
        %908 = vmatprep.subr.bf16.mxu0 0
        %909 = vmatpush1.bf16.xpose.msra.mxu0 0
        %910 = vmatprep.subr.bf16.mxu0 0
        %911 = vmatpush1.bf16.xpose.msra.mxu0 0
        %912 = vmatprep.subr.bf16.mxu0 0
        %913 = vmatpush1.bf16.xpose.msra.mxu0 0
        %914 = vmatprep.subr.bf16.mxu0 0
        %915 = vmatpush1.bf16.xpose.msra.mxu0 0
        %916 = vmatprep.subr.bf16.mxu0 0
        %917 = vmatpush1.bf16.xpose.msra.mxu0 0
        %918 = vmatprep.subr.bf16.mxu0 0
        %919 = vmatpush1.bf16.xpose.msra.mxu0 0
        %920 = vmatprep.subr.bf16.mxu0 0
        %921 = vmatpush1.bf16.xpose.msra.mxu0 0
        %922 = vmatprep.subr.bf16.mxu0 0
        %923 = vmatpush1.bf16.xpose.msra.mxu0 0
        %924 = vmatprep.subr.bf16.mxu0 0
        %925 = vmatpush1.bf16.xpose.msra.mxu0 0
        %926 = vmatprep.subr.bf16.mxu0 0
        %927 = vmatpush1.bf16.xpose.msra.mxu0 0
        %928 = vmatprep.subr.bf16.mxu0 0
        %929 = vmatpush1.bf16.xpose.msra.mxu0 0
        %930 = vmatprep.subr.bf16.mxu0 0
        %931 = vmatpush1.bf16.xpose.msra.mxu0 0
        %932 = vmatprep.mubr.bf16.mxu0 0
        %933 = vmatmul.mubr.bf16.gmra.mrb[0].mxu0 %v895
        %v934 = vpop.f32.mrb[0].mxu0
        %v935 = vadd.f32 %v525, %v934
        %v936 = vpop.f32.mrb[0].mxu0
        %v937 = vpop.f32.mrb[0].mxu0
        %v938 = vpop.f32.mrb[0].mxu0
        %939 = vdwg.mxu0
        %v940 = vsel %vm663, %v935, -inf
        %941 = vmax.xlane.f32.xlu0 %v940
        %v942 = vpop.xlane.xlu0 %941
        %v943 = vsub.f32 %v935, %v942
        %v944 = vmul.f32 %v943, 1.442695
        %v945 = vpow.pop %v944
        %v946 = vsel %vm663, %v945, 0.0
        %947 = vadd.xlane.f32.xlu0 %v946
        %v948 = vpop.xlane.xlu0 %947
        %v949 = vrcp.pop %v948
        %v950 = vmul.f32 %v945, %v949
        %v951 = vpack.c.bf16 %v950, %v950
        %952 = vrot.lane.b32.xlu0 %v662, 80
        %v953 = vpop.permute.xlu0 %952
        %v955 = vsel %vm663, %v951, 0
        %v958 = vsel %vm728, %v953, 0
        %960 = vmatprep.subr.bf16.mxu0 0
        %961 = vmatpush1.bf16.msra.mxu0 %v958
        %962 = vmatprep.subr.bf16.mxu0 0
        %963 = vmatpush1.bf16.msra.mxu0 0
        %964 = vmatprep.subr.bf16.mxu0 0
        %965 = vmatpush1.bf16.msra.mxu0 0
        %966 = vmatprep.subr.bf16.mxu0 0
        %967 = vmatpush1.bf16.msra.mxu0 0
        %968 = vmatprep.subr.bf16.mxu0 0
        %969 = vmatpush1.bf16.msra.mxu0 0
        %970 = vmatprep.subr.bf16.mxu0 0
        %971 = vmatpush1.bf16.msra.mxu0 0
        %972 = vmatprep.subr.bf16.mxu0 0
        %973 = vmatpush1.bf16.msra.mxu0 0
        %974 = vmatprep.subr.bf16.mxu0 0
        %975 = vmatpush1.bf16.msra.mxu0 0
        %976 = vmatprep.subr.bf16.mxu0 0
        %977 = vmatpush1.bf16.msra.mxu0 0
        %978 = vmatprep.subr.bf16.mxu0 0
        %979 = vmatpush1.bf16.msra.mxu0 0
        %980 = vmatprep.subr.bf16.mxu0 0
        %981 = vmatpush1.bf16.msra.mxu0 0
        %982 = vmatprep.subr.bf16.mxu0 0
        %983 = vmatpush1.bf16.msra.mxu0 0
        %984 = vmatprep.subr.bf16.mxu0 0
        %985 = vmatpush1.bf16.msra.mxu0 0
        %986 = vmatprep.subr.bf16.mxu0 0
        %987 = vmatpush1.bf16.msra.mxu0 0
        %988 = vmatprep.subr.bf16.mxu0 0
        %989 = vmatpush1.bf16.msra.mxu0 0
        %990 = vmatprep.subr.bf16.mxu0 0
        %991 = vmatpush1.bf16.msra.mxu0 0
        %992 = vmatprep.mubr.bf16.mxu0 0
        %993 = vmatmul.mubr.bf16.gmra.mrb[0].mxu0 %v955
        %v994 = vpop.f32.mrb[0].mxu0
        %v995 = vadd.f32 0.0, %v994
        %v996 = vpop.f32.mrb[0].mxu0
        %v997 = vpop.f32.mrb[0].mxu0
        %v998 = vpop.f32.mrb[0].mxu0
        %999 = vdwg.mxu0
        %1001 = vrot.lane.b32.xlu0 %v995, 16
        %v1002 = vpop.permute.xlu0 %1001
        %vm1004 = vcmask 195712
        %1005 = vst.msk [vmem:[#allocation2] sm:$0xff] %vm1004, %v1002
        %1006 = vrot.lane.b32.xlu0 %v661, 104
        %v1007 = vpop.permute.xlu0 %1006
        %1008 = vrot.lane.b32.xlu0 %v662, 104
        %v1009 = vpop.permute.xlu0 %1008
        %v1011 = vsel %vm663, %v1007, 0
        %v1014 = vsel %vm663, %v1009, 0
        %1016 = vmatprep.subr.bf16.mxu0 0
        %1017 = vmatpush1.bf16.xpose.msra.mxu0 %v1014
        %1018 = vmatprep.subr.bf16.mxu0 0
        %1019 = vmatpush1.bf16.xpose.msra.mxu0 0
        %1020 = vmatprep.subr.bf16.mxu0 0
        %1021 = vmatpush1.bf16.xpose.msra.mxu0 0
        %1022 = vmatprep.subr.bf16.mxu0 0
        %1023 = vmatpush1.bf16.xpose.msra.mxu0 0
        %1024 = vmatprep.subr.bf16.mxu0 0
        %1025 = vmatpush1.bf16.xpose.msra.mxu0 0
        %1026 = vmatprep.subr.bf16.mxu0 0
        %1027 = vmatpush1.bf16.xpose.msra.mxu0 0
        %1028 = vmatprep.subr.bf16.mxu0 0
        %1029 = vmatpush1.bf16.xpose.msra.mxu0 0
        %1030 = vmatprep.subr.bf16.mxu0 0
        %1031 = vmatpush1.bf16.xpose.msra.mxu0 0
        %1032 = vmatprep.subr.bf16.mxu0 0
        %1033 = vmatpush1.bf16.xpose.msra.mxu0 0
        %1034 = vmatprep.subr.bf16.mxu0 0
        %1035 = vmatpush1.bf16.xpose.msra.mxu0 0
        %1036 = vmatprep.subr.bf16.mxu0 0
        %1037 = vmatpush1.bf16.xpose.msra.mxu0 0
        %1038 = vmatprep.subr.bf16.mxu0 0
        %1039 = vmatpush1.bf16.xpose.msra.mxu0 0
        %1040 = vmatprep.subr.bf16.mxu0 0
        %1041 = vmatpush1.bf16.xpose.msra.mxu0 0
        %1042 = vmatprep.subr.bf16.mxu0 0
        %1043 = vmatpush1.bf16.xpose.msra.mxu0 0
        %1044 = vmatprep.subr.bf16.mxu0 0
        %1045 = vmatpush1.bf16.xpose.msra.mxu0 0
        %1046 = vmatprep.subr.bf16.mxu0 0
        %1047 = vmatpush1.bf16.xpose.msra.mxu0 0
        %1048 = vmatprep.mubr.bf16.mxu0 0
        %1049 = vmatmul.mubr.bf16.gmra.mrb[0].mxu0 %v1011
        %v1050 = vpop.f32.mrb[0].mxu0
        %v1051 = vadd.f32 %v525, %v1050
        %v1052 = vpop.f32.mrb[0].mxu0
        %v1053 = vpop.f32.mrb[0].mxu0
        %v1054 = vpop.f32.mrb[0].mxu0
        %1055 = vdwg.mxu0
        %v1056 = vsel %vm663, %v1051, -inf
        %1057 = vmax.xlane.f32.xlu0 %v1056
        %v1058 = vpop.xlane.xlu0 %1057
        %v1059 = vsub.f32 %v1051, %v1058
        %v1060 = vmul.f32 %v1059, 1.442695
        %v1061 = vpow.pop %v1060
        %v1062 = vsel %vm663, %v1061, 0.0
        %1063 = vadd.xlane.f32.xlu0 %v1062
        %v1064 = vpop.xlane.xlu0 %1063
        %v1065 = vrcp.pop %v1064
        %v1066 = vmul.f32 %v1061, %v1065
        %v1067 = vpack.c.bf16 %v1066, %v1066
        %1068 = vrot.lane.b32.xlu0 %v662, 72
        %v1069 = vpop.permute.xlu0 %1068
        %v1071 = vsel %vm663, %v1067, 0
        %v1074 = vsel %vm728, %v1069, 0
        %1076 = vmatprep.subr.bf16.mxu0 0
        %1077 = vmatpush1.bf16.msra.mxu0 %v1074
        %1078 = vmatprep.subr.bf16.mxu0 0
        %1079 = vmatpush1.bf16.msra.mxu0 0
        %1080 = vmatprep.subr.bf16.mxu0 0
        %1081 = vmatpush1.bf16.msra.mxu0 0
        %1082 = vmatprep.subr.bf16.mxu0 0
        %1083 = vmatpush1.bf16.msra.mxu0 0
        %1084 = vmatprep.subr.bf16.mxu0 0
        %1085 = vmatpush1.bf16.msra.mxu0 0
        %1086 = vmatprep.subr.bf16.mxu0 0
        %1087 = vmatpush1.bf16.msra.mxu0 0
        %1088 = vmatprep.subr.bf16.mxu0 0
        %1089 = vmatpush1.bf16.msra.mxu0 0
        %1090 = vmatprep.subr.bf16.mxu0 0
        %1091 = vmatpush1.bf16.msra.mxu0 0
        %1092 = vmatprep.subr.bf16.mxu0 0
        %1093 = vmatpush1.bf16.msra.mxu0 0
        %1094 = vmatprep.subr.bf16.mxu0 0
        %1095 = vmatpush1.bf16.msra.mxu0 0
        %1096 = vmatprep.subr.bf16.mxu0 0
        %1097 = vmatpush1.bf16.msra.mxu0 0
        %1098 = vmatprep.subr.bf16.mxu0 0
        %1099 = vmatpush1.bf16.msra.mxu0 0
        %1100 = vmatprep.subr.bf16.mxu0 0
        %1101 = vmatpush1.bf16.msra.mxu0 0
        %1102 = vmatprep.subr.bf16.mxu0 0
        %1103 = vmatpush1.bf16.msra.mxu0 0
        %1104 = vmatprep.subr.bf16.mxu0 0
        %1105 = vmatpush1.bf16.msra.mxu0 0
        %1106 = vmatprep.subr.bf16.mxu0 0
        %1107 = vmatpush1.bf16.msra.mxu0 0
        %1108 = vmatprep.mubr.bf16.mxu0 0
        %1109 = vmatmul.mubr.bf16.gmra.mrb[0].mxu0 %v1071
        %v1110 = vpop.f32.mrb[0].mxu0
        %v1111 = vadd.f32 0.0, %v1110
        %v1112 = vpop.f32.mrb[0].mxu0
        %v1113 = vpop.f32.mrb[0].mxu0
        %v1114 = vpop.f32.mrb[0].mxu0
        %1115 = vdwg.mxu0
        %1117 = vrot.lane.b32.xlu0 %v1111, 24
        %v1118 = vpop.permute.xlu0 %1117
        %vm1120 = vcmask 261312
        %1121 = vst.msk [vmem:[#allocation2] sm:$0xff] %vm1120, %v1118
        %v1122 = vld [vmem:[#allocation2] sm:$0xff]
        %v1123 = vpack.c.bf16 %v1122, %v1122
        %v1124 = vld [vmem:[#allocation11] sm:$0xf]
        %v1125 = vld [vmem:[#allocation11 + $0x4] sm:$0xf]
        %v1126 = vld [vmem:[#allocation11 + $0x8] sm:$0xf]
        %v1127 = vld [vmem:[#allocation11 + $0xc] sm:$0xf]
        %v1128 = vld [vmem:[%s8] sm:$0x1]
        %v1130 = vlaneseq
        %v1131 = vshrl.u32 %v1130, 7
        %v1132 = vsub.s32 0, %v1131
        %v1133 = vrot.slane %v1128, %v1132
        %v1139 = vunpack.c.l.b16 %v1124
        %v1140 = vunpack.c.l.b16 %v1125
        %v1141 = vunpack.c.l.b16 %v1126
        %v1142 = vunpack.c.l.b16 %v1127
        %v1143 = vpack.c.b16 %v1140, %v1139
        %v1144 = vpack.c.b16 %v1142, %v1141
        %v1148 = vsel %vm550, %v1123, 0
        %1150 = vmatprep.subr.bf16.mxu0 0
        %1151 = vmatpush1.bf16.msra.mxu0 %v1143
        %1152 = vmatprep.subr.bf16.mxu0 0
        %1153 = vmatpush1.bf16.msra.mxu0 %v1144
        %1154 = vmatprep.subr.bf16.mxu0 0
        %1155 = vmatpush1.bf16.msra.mxu0 0
        %1156 = vmatprep.subr.bf16.mxu0 0
        %1157 = vmatpush1.bf16.msra.mxu0 0
        %1158 = vmatprep.subr.bf16.mxu0 0
        %1159 = vmatpush1.bf16.msra.mxu0 0
        %1160 = vmatprep.subr.bf16.mxu0 0
        %1161 = vmatpush1.bf16.msra.mxu0 0
        %1162 = vmatprep.subr.bf16.mxu0 0
        %1163 = vmatpush1.bf16.msra.mxu0 0
        %1164 = vmatprep.subr.bf16.mxu0 0
        %1165 = vmatpush1.bf16.msra.mxu0 0
        %1166 = vmatprep.subr.bf16.mxu0 0
        %1167 = vmatpush1.bf16.msra.mxu0 0
        %1168 = vmatprep.subr.bf16.mxu0 0
        %1169 = vmatpush1.bf16.msra.mxu0 0
        %1170 = vmatprep.subr.bf16.mxu0 0
        %1171 = vmatpush1.bf16.msra.mxu0 0
        %1172 = vmatprep.subr.bf16.mxu0 0
        %1173 = vmatpush1.bf16.msra.mxu0 0
        %1174 = vmatprep.subr.bf16.mxu0 0
        %1175 = vmatpush1.bf16.msra.mxu0 0
        %1176 = vmatprep.subr.bf16.mxu0 0
        %1177 = vmatpush1.bf16.msra.mxu0 0
        %1178 = vmatprep.subr.bf16.mxu0 0
        %1179 = vmatpush1.bf16.msra.mxu0 0
        %1180 = vmatprep.subr.bf16.mxu0 0
        %1181 = vmatpush1.bf16.msra.mxu0 0
        %1182 = vmatprep.mubr.bf16.mxu0 0
        %1183 = vmatmul.mubr.bf16.gmra.mrb[0].mxu0 %v1148
        %v1184 = vpop.f32.mrb[0].mxu0
        %v1185 = vadd.f32 %v1133, %v1184
        %v1186 = vpop.f32.mrb[0].mxu0
        %v1187 = vpop.f32.mrb[0].mxu0
        %v1188 = vpop.f32.mrb[0].mxu0
        %1189 = vdwg.mxu0
        %v1190 = vadd.f32 %v1185, %v523
        %v1191 = vld [vmem:[%s9] sm:$0x1]
        %v1192 = vld [vmem:[%s10] sm:$0x1]
        %v1193 = vsel %vm550, %v1190, 0.0
        %1194 = vadd.xlane.f32.xlu0 %v1193
        %v1195 = vpop.xlane.xlu0 %1194
        %v1196 = vrcp.pop 32.0
        %v1197 = vmul.f32 %v1195, %v1196
        %v1198 = vsub.f32 %v1190, %v1197
        %v1199 = vmul.f32 %v1198, %v1198
        %v1200 = vsel %vm550, %v1199, 0.0
        %1201 = vadd.xlane.f32.xlu0 %v1200
        %v1202 = vpop.xlane.xlu0 %1201
        %v1203 = vmul.f32 %v1202, %v1196
        %v1204 = vadd.f32 %v1203, 1e-12
        %v1205 = vrsqrt.pop %v1204
        %v1206 = vmul.f32 %v1198, %v1205
        %v1208 = vlaneseq
        %v1209 = vshrl.u32 %v1208, 7
        %v1210 = vsub.s32 0, %v1209
        %v1211 = vrot.slane %v1191, %v1210
        %v1213 = vmul.f32 %v1206, %v1211
        %v1215 = vlaneseq
        %v1216 = vshrl.u32 %v1215, 7
        %v1217 = vsub.s32 0, %v1216
        %v1218 = vrot.slane %v1192, %v1217
        %v1220 = vadd.f32 %v1213, %v1218
        %1221 = vst.msk [vmem:[%s521] sm:$0xff] %vm550, %v1220
        %s1222 = sand.u32 %s304, 1
        %s1223 = scalar_lea.sflag [#allocation5], %s1222
        %s1224 = sand.u32 %s304, 1
        %s1225 = smul.addr %s1224, 8
        %s1226 = scalar_lea.vmem [#allocation12], %s1225
        // Predicated region
        $region85: #{tpu_custom_call.1} parent=63 // pred_check
          %p1227 = pneg %p314
        $region86: #{tpu_custom_call.1} parent=63 // pred_check_branch
          %1229 = sbr.rel (%p1227) target = $region88
        $region87: #{tpu_custom_call.1} parent=63 // pred_region
          %s1231 = ssub.s32 128, 128
          %1232 = vsyncadd %s1223, %s1231
          %s1233 = sadd.s32 %s37, %s36
          %s1234 = smul.addr %s1233, 128
          %s1235 = scalar_lea.hbm %s11, %s1234
          %s1237 = sshll.u32 %s1226, 4
          %s1238 = int_to_ptr.vmem [resolvable:$true] %s1237
          %1240 = dma.vmem_to_hbm [thread:$0]  %s1238, 128, %s1235, %s1223
        $region88: #{tpu_custom_call.1} parent=63 // pred_fallthru
          _
      $region64: #{tpu_custom_call.1} parent=5 // pred_fallthru
        _
      %p1241 = scmp.le.s32.totalorder 2, %s27
      // Predicated region
      $region89: #{tpu_custom_call.1} parent=5 // pred_check
        %p1242 = pneg %p1241
      $region90: #{tpu_custom_call.1} parent=5 // pred_check_branch
        %1244 = sbr.rel (%p1242) target = $region92
      $region91: #{tpu_custom_call.1} parent=5 // pred_region
        %s1245 = ssub.s32 %s27, 2
        // Predicated region
        $region93: #{tpu_custom_call.1} parent=91 // pred_check
          %p1246 = pneg %p320
        $region94: #{tpu_custom_call.1} parent=91 // pred_check_branch
          %1248 = sbr.rel (%p1246) target = $region96
        $region95: #{tpu_custom_call.1} parent=91 // pred_region
          %s1249 = sand.u32 %s305, 1
          %s1250 = scalar_lea.sflag [#allocation5], %s1249
          %s1251 = sand.u32 %s305, 1
          %s1252 = smul.addr %s1251, 8
          %s1253 = scalar_lea.vmem [#allocation12], %s1252
          %1254 = dma.done %s1250, 128
        $region96: #{tpu_custom_call.1} parent=91 // pred_fallthru
          _
      $region92: #{tpu_custom_call.1} parent=5 // pred_fallthru
        _
    $region6: #{tpu_custom_call.1} parent=1 // loop_footer
      %s31 = sadd.s32 1, %s27
    $region7: #{tpu_custom_call.1} parent=1 // loop_footer_branch
      %26 = sbr.rel target = $region3
    $region8: #{tpu_custom_call.1} parent=1 // loop_exit
      _
    %1255 = vsyncpa [#allocation4], 1
    %s1256 = scalar_lea.sflag [#allocation4], 1
    %1257 = vsyncpa %s1256, 1
    %1258 = vsyncpa [#allocation7], 1
    %s1259 = scalar_lea.sflag [#allocation7], 1
    %1260 = vsyncpa %s1259, 1
    %1261 = vsyncpa [#allocation10], 1
    %1262 = vsyncpa [#allocation5], 1
    %s1263 = scalar_lea.sflag [#allocation5], 1
    %1264 = vsyncpa %s1263, 1

</llo_original>
